<compile_context>
chip_gen: v7x
topology: tpu7x:2x2x1
jax: 0.10.0
libtpu: 0.0.40
codegen_flags: <defaults>
</compile_context>

<pallas_src>
import functools

import jax
import jax.numpy as jnp
from jax import lax
from jax.experimental import pallas as pl
from jax.experimental.pallas import tpu as pltpu


def _round_up(x, m):
    return ((x + m - 1) // m) * m


def _ff_bridge_kernel(x_ref, w1_ref, b1_ref, w2_ref, b2_ref, gamma_ref, beta_ref,
                      o_ref, acc_ref, *, d_real, eps):
    # x_ref:  (TM, Dp)      w1_ref: (Dp, TH)   b1_ref: (1, TH)
    # w2_ref: (TH, Dp)      b2/gamma/beta: (1, Dp)
    # o_ref:  (TM, Dp)      acc_ref: f32 VMEM scratch (TM, Dp)
    k = pl.program_id(1)

    @pl.when(k == 0)
    def _():
        acc_ref[...] = jnp.zeros_like(acc_ref)

    # Linear1 chunk + ReLU: (TM, Dp) @ (Dp, TH) -> f32, native-dtype MXU operands.
    h = jnp.dot(x_ref[...], w1_ref[...], preferred_element_type=jnp.float32)
    h = jnp.maximum(h + b1_ref[...].astype(jnp.float32), 0.0)

    # Linear2 partial: (TM, TH) @ (TH, Dp), accumulate in f32.
    acc_ref[...] += jnp.dot(h.astype(w2_ref.dtype), w2_ref[...],
                            preferred_element_type=jnp.float32)

    @pl.when(k == pl.num_programs(1) - 1)
    def _():
        y = acc_ref[...] + b2_ref[...].astype(jnp.float32)
        d_pad = y.shape[-1]
        if d_pad != d_real:
            col = lax.broadcasted_iota(jnp.int32, (1, d_pad), 1)
            mask = (col < d_real).astype(jnp.float32)
            y = y * mask
        # LayerNorm over the *real* D columns (eps inside rsqrt, biased variance),
        # matching nn.LayerNorm(input_size, eps=1e-6). All math stays in f32.
        inv_d = 1.0 / d_real
        mean = jnp.sum(y, axis=-1, keepdims=True) * inv_d
        diff = y - mean
        if d_pad != d_real:
            diff = diff * mask
        var = jnp.sum(diff * diff, axis=-1, keepdims=True) * inv_d
        out = diff * lax.rsqrt(var + eps)
        out = out * gamma_ref[...].astype(jnp.float32) + beta_ref[...].astype(jnp.float32)
        o_ref[...] = out.astype(o_ref.dtype)


def feedforward_attention_bridge(intermediate_output, params, *,
                                 tile_rows=256, tile_hidden=512, eps=1e-6):
    """
    intermediate_output: (batch, seq_len, input_size)
    params: dict with w1 (D,H), b1 (H,), w2 (H,D), b2 (D,), gamma (D,), beta (D,)
            (weights stored as (in, out), i.e. PyTorch W.T, so kernel does x @ W + b)
    Returns (None, out) with out shaped (batch, seq_len, input_size), mirroring the
    PyTorch module's forward.
    """
    B, S, D = intermediate_output.shape
    H = params["w1"].shape[1]
    dtype = intermediate_output.dtype

    # --- padded / tiled geometry -------------------------------------------------
    M = B * S
    TM = tile_rows                      # multiple of 8 (here 256 >= MXU dim)
    Mp = _round_up(M, TM)
    Dp = _round_up(D, 128)              # lane-dense feature dim
    if H <= tile_hidden:
        TH = _round_up(H, 128)
        Hp = TH                         # single reduction chunk
    else:
        TH = tile_hidden
        Hp = _round_up(H, TH)

    # --- zero-pad operands (padding is mathematically inert) ----------------------
    x2d = intermediate_output.reshape(M, D)
    x2d = jnp.pad(x2d, ((0, Mp - M), (0, Dp - D)))
    w1 = jnp.pad(params["w1"], ((0, Dp - D), (0, Hp - H)))
    b1 = jnp.pad(params["b1"], (0, Hp - H)).reshape(1, Hp)
    w2 = jnp.pad(params["w2"], ((0, Hp - H), (0, Dp - D)))
    b2 = jnp.pad(params["b2"], (0, Dp - D)).reshape(1, Dp)
    gamma = jnp.pad(params["gamma"], (0, Dp - D)).reshape(1, Dp)
    beta = jnp.pad(params["beta"], (0, Dp - D)).reshape(1, Dp)

    grid = (Mp // TM, Hp // TH)          # rows parallel, hidden reduction arbitrary

    kernel = functools.partial(_ff_bridge_kernel, d_real=D, eps=eps)

    itemsize = jnp.dtype(dtype).itemsize
    cost = pl.CostEstimate(
        flops=4 * Mp * Dp * Hp + 10 * Mp * Dp,
        transcendentals=Mp,
        bytes_accessed=(x2d.size + w1.size + w2.size) * itemsize + Mp * Dp * itemsize,
    )

    out2d = pl.pallas_call(
        kernel,
        out_shape=jax.ShapeDtypeStruct((Mp, Dp), dtype),
        grid_spec=pltpu.PrefetchScalarGridSpec(
            num_scalar_prefetch=0,
            grid=grid,
            in_specs=[
                pl.BlockSpec((TM, Dp), lambda i, k: (i, 0)),   # x rows
                pl.BlockSpec((Dp, TH), lambda i, k: (0, k)),   # w1 hidden-chunk
                pl.BlockSpec((1, TH), lambda i, k: (0, k)),    # b1 hidden-chunk
                pl.BlockSpec((TH, Dp), lambda i, k: (k, 0)),   # w2 hidden-chunk
                pl.BlockSpec((1, Dp), lambda i, k: (0, 0)),    # b2
                pl.BlockSpec((1, Dp), lambda i, k: (0, 0)),    # gamma
                pl.BlockSpec((1, Dp), lambda i, k: (0, 0)),    # beta
            ],
            out_specs=pl.BlockSpec((TM, Dp), lambda i, k: (i, 0)),
            scratch_shapes=[pltpu.VMEM((TM, Dp), jnp.float32)],  # f32 accumulator
        ),
        compiler_params=pltpu.CompilerParams(
            dimension_semantics=("parallel", "arbitrary"),
            vmem_limit_bytes=64 * 1024 * 1024,
        ),
        cost_estimate=cost,
    )(x2d, w1, b1, w2, b2, gamma, beta)

    out = out2d[:M, :D].reshape(B, S, D)
    return (None, out)


def init_params(key, input_size, hidden_size, dtype=jnp.float32):
    """Deterministic synthetic init matching nn.Linear / nn.LayerNorm shapes."""
    k1, k2, k3, k4 = jax.random.split(key, 4)
    # PyTorch nn.Linear stores (out, in); we store (in, out) = W.T for x @ W.
    lim1 = 1.0 / (input_size ** 0.5)
    lim2 = 1.0 / (hidden_size ** 0.5)
    w1 = jax.random.uniform(k1, (input_size, hidden_size), dtype, -lim1, lim1)
    b1 = jax.random.uniform(k2, (hidden_size,), dtype, -lim1, lim1)
    w2 = jax.random.uniform(k3, (hidden_size, input_size), dtype, -lim2, lim2)
    b2 = jax.random.uniform(k4, (input_size,), dtype, -lim2, lim2)
    gamma = jnp.ones((input_size,), dtype)   # nn.LayerNorm default weight
    beta = jnp.zeros((input_size,), dtype)   # nn.LayerNorm default bias
    return {"w1": w1, "b1": b1, "w2": w2, "b2": b2, "gamma": gamma, "beta": beta}


def _reference(x, p):
    h = jnp.maximum(x @ p["w1"] + p["b1"], 0.0)
    y = h @ p["w2"] + p["b2"]
    mean = jnp.mean(y, axis=-1, keepdims=True)
    var = jnp.mean(jnp.square(y - mean), axis=-1, keepdims=True)
    return (y - mean) * lax.rsqrt(var + 1e-6) * p["gamma"] + p["beta"]


if __name__ == "__main__":
    batch, seq_len, input_size, hidden_size = 2, 8, 32, 64

    key = jax.random.PRNGKey(0)
    kx, kp = jax.random.split(key)
    x = jax.random.normal(kx, (batch, seq_len, input_size), jnp.float32)
    params = init_params(kp, input_size, hidden_size)

    _, out = feedforward_attention_bridge(x, params)
    out = jax.block_until_ready(out)

    ref = _reference(x, params)
    assert out.shape == (batch, seq_len, input_size)
    assert jnp.allclose(out, ref, atol=1e-5, rtol=1e-5), "mismatch vs reference"

    print("KERNEL_OK")
</pallas_src>

<mosaic_0001>
module attributes {stable_mosaic.version = 11 : i64} {
  func.func @_ff_bridge_kernel(%arg0: i32, %arg1: i32, %arg2: memref<256x128xf32, #tpu.memory_space<vmem>>, %arg3: memref<128x128xf32, #tpu.memory_space<vmem>>, %arg4: memref<1x128xf32, #tpu.memory_space<vmem>>, %arg5: memref<128x128xf32, #tpu.memory_space<vmem>>, %arg6: memref<1x128xf32, #tpu.memory_space<vmem>>, %arg7: memref<1x128xf32, #tpu.memory_space<vmem>>, %arg8: memref<1x128xf32, #tpu.memory_space<vmem>>, %arg9: memref<256x128xf32, #tpu.memory_space<vmem>>, %arg10: memref<256x128xf32, #tpu.memory_space<vmem>>) attributes {dimension_semantics = [#tpu.dimension_semantics<parallel>, #tpu.dimension_semantics<arbitrary>], iteration_bounds = array<i64: 1, 1>, scalar_prefetch = 0 : i64, scratch_operands = 1 : i64, tpu.core_type = #tpu.core_type<tc>, window_params = [{transform_indices = @transform_0, window_bounds = array<i64: 256, 128>}, {transform_indices = @transform_1, window_bounds = array<i64: 128, 128>}, {transform_indices = @transform_2, window_bounds = array<i64: 1, 128>}, {transform_indices = @transform_3, window_bounds = array<i64: 128, 128>}, {pipeline_mode = #tpu.pipeline_mode<synchronous>, transform_indices = @transform_4, window_bounds = array<i64: 1, 128>}, {pipeline_mode = #tpu.pipeline_mode<synchronous>, transform_indices = @transform_5, window_bounds = array<i64: 1, 128>}, {pipeline_mode = #tpu.pipeline_mode<synchronous>, transform_indices = @transform_6, window_bounds = array<i64: 1, 128>}, {transform_indices = @transform_7, window_bounds = array<i64: 256, 128>}]} {
    %c0_i32 = arith.constant 0 : i32
    %0 = arith.cmpi eq, %arg1, %c0_i32 : i32
    %1 = arith.extui %0 : i1 to i32
    %c0_i32_0 = arith.constant 0 : i32
    %2 = arith.cmpi ne, %1, %c0_i32_0 : i32
    scf.if %2 {
      %cst_16 = arith.constant 0.000000e+00 : f32
      %19 = vector.broadcast %cst_16 : f32 to vector<256x128xf32>
      %c0_17 = arith.constant 0 : index
      %c0_18 = arith.constant 0 : index
      %20 = vector.load %arg10[%c0_17, %c0_18] : memref<256x128xf32, #tpu.memory_space<vmem>>, vector<256x128xf32>
      tpu.vector_store %arg10[%c0_17, %c0_18], %19 {strides = array<i32>} : memref<256x128xf32, #tpu.memory_space<vmem>>, vector<256x128xf32>,
    } else {
    }
    %c0 = arith.constant 0 : index
    %c0_1 = arith.constant 0 : index
    %3 = vector.load %arg2[%c0, %c0_1] : memref<256x128xf32, #tpu.memory_space<vmem>>, vector<256x128xf32>
    %c0_2 = arith.constant 0 : index
    %c0_3 = arith.constant 0 : index
    %4 = vector.load %arg3[%c0_2, %c0_3] : memref<128x128xf32, #tpu.memory_space<vmem>>, vector<128x128xf32>
    %cst = arith.constant dense<0.000000e+00> : vector<256x128xf32>
    %5 = tpu.matmul %3, %4, %cst {dimension_numbers = #tpu.dot_dimension_numbers<[1], [0], [0], [1], [0, 0, 1, 1], [], []>} : vector<256x128xf32>, vector<128x128xf32>, vector<256x128xf32> -> vector<256x128xf32>
    %c0_4 = arith.constant 0 : index
    %c0_5 = arith.constant 0 : index
    %6 = vector.load %arg4[%c0_4, %c0_5] : memref<1x128xf32, #tpu.memory_space<vmem>>, vector<1x128xf32>
    %7 = vector.broadcast %6 : vector<1x128xf32> to vector<256x128xf32>
    %8 = arith.addf %5, %7 : vector<256x128xf32>
    %cst_6 = arith.constant 0.000000e+00 : f32
    %9 = vector.broadcast %cst_6 : f32 to vector<256x128xf32>
    %10 = arith.maximumf %8, %9 : vector<256x128xf32>
    %c0_7 = arith.constant 0 : index
    %c0_8 = arith.constant 0 : index
    %11 = vector.load %arg10[%c0_7, %c0_8] : memref<256x128xf32, #tpu.memory_space<vmem>>, vector<256x128xf32>
    %c0_9 = arith.constant 0 : index
    %c0_10 = arith.constant 0 : index
    %12 = vector.load %arg5[%c0_9, %c0_10] : memref<128x128xf32, #tpu.memory_space<vmem>>, vector<128x128xf32>
    %cst_11 = arith.constant dense<0.000000e+00> : vector<256x128xf32>
    %13 = tpu.matmul %10, %12, %cst_11 {dimension_numbers = #tpu.dot_dimension_numbers<[1], [0], [0], [1], [0, 0, 1, 1], [], []>} : vector<256x128xf32>, vector<128x128xf32>, vector<256x128xf32> -> vector<256x128xf32>
    %14 = arith.addf %11, %13 : vector<256x128xf32>
    %c0_12 = arith.constant 0 : index
    %c0_13 = arith.constant 0 : index
    %15 = vector.load %arg10[%c0_12, %c0_13] : memref<256x128xf32, #tpu.memory_space<vmem>>, vector<256x128xf32>
    tpu.vector_store %arg10[%c0_12, %c0_13], %14 {strides = array<i32>} : memref<256x128xf32, #tpu.memory_space<vmem>>, vector<256x128xf32>,
    %c0_i32_14 = arith.constant 0 : i32
    %16 = arith.cmpi eq, %arg1, %c0_i32_14 : i32
    %17 = arith.extui %16 : i1 to i32
    %c0_i32_15 = arith.constant 0 : i32
    %18 = arith.cmpi ne, %17, %c0_i32_15 : i32
    scf.if %18 {
      %c0_16 = arith.constant 0 : index
      %c0_17 = arith.constant 0 : index
      %19 = vector.load %arg10[%c0_16, %c0_17] : memref<256x128xf32, #tpu.memory_space<vmem>>, vector<256x128xf32>
      %c0_18 = arith.constant 0 : index
      %c0_19 = arith.constant 0 : index
      %20 = vector.load %arg6[%c0_18, %c0_19] : memref<1x128xf32, #tpu.memory_space<vmem>>, vector<1x128xf32>
      %21 = vector.broadcast %20 : vector<1x128xf32> to vector<256x128xf32>
      %22 = arith.addf %19, %21 : vector<256x128xf32>
      %23 = tpu.iota {dimensions = array<i32: 1>} : vector<1x128xi32>
      %c32_i32 = arith.constant 32 : i32
      %24 = vector.broadcast %c32_i32 : i32 to vector<1x128xi32>
      %25 = arith.cmpi slt, %23, %24 : vector<1x128xi32>
      %26 = arith.extui %25 : vector<1x128xi1> to vector<1x128xi32>
      %27 = arith.sitofp %26 : vector<1x128xi32> to vector<1x128xf32>
      %28 = vector.broadcast %27 : vector<1x128xf32> to vector<256x128xf32>
      %29 = arith.mulf %22, %28 : vector<256x128xf32>
      %cst_20 = arith.constant dense<0.000000e+00> : vector<256xf32>
      %30 = vector.multi_reduction <add>, %29, %cst_20 [1] : vector<256x128xf32> to vector<256xf32>
      %31 = vector.shape_cast %30 : vector<256xf32> to vector<256x1xf32>
      %cst_21 = arith.constant 3.125000e-02 : f32
      %32 = vector.broadcast %cst_21 : f32 to vector<256x1xf32>
      %33 = arith.mulf %31, %32 : vector<256x1xf32>
      %34 = vector.broadcast %33 : vector<256x1xf32> to vector<256x128xf32>
      %35 = arith.subf %29, %34 : vector<256x128xf32>
      %36 = vector.broadcast %27 : vector<1x128xf32> to vector<256x128xf32>
      %37 = arith.mulf %35, %36 : vector<256x128xf32>
      %38 = arith.mulf %37, %37 : vector<256x128xf32>
      %cst_22 = arith.constant dense<0.000000e+00> : vector<256xf32>
      %39 = vector.multi_reduction <add>, %38, %cst_22 [1] : vector<256x128xf32> to vector<256xf32>
      %40 = vector.shape_cast %39 : vector<256xf32> to vector<256x1xf32>
      %cst_23 = arith.constant 3.125000e-02 : f32
      %41 = vector.broadcast %cst_23 : f32 to vector<256x1xf32>
      %42 = arith.mulf %40, %41 : vector<256x1xf32>
      %cst_24 = arith.constant 9.99999997E-7 : f32
      %43 = vector.broadcast %cst_24 : f32 to vector<256x1xf32>
      %44 = arith.addf %42, %43 : vector<256x1xf32>
      %45 = math.rsqrt %44 : vector<256x1xf32>
      %46 = vector.broadcast %45 : vector<256x1xf32> to vector<256x128xf32>
      %47 = arith.mulf %37, %46 : vector<256x128xf32>
      %c0_25 = arith.constant 0 : index
      %c0_26 = arith.constant 0 : index
      %48 = vector.load %arg7[%c0_25, %c0_26] : memref<1x128xf32, #tpu.memory_space<vmem>>, vector<1x128xf32>
      %49 = vector.broadcast %48 : vector<1x128xf32> to vector<256x128xf32>
      %50 = arith.mulf %47, %49 : vector<256x128xf32>
      %c0_27 = arith.constant 0 : index
      %c0_28 = arith.constant 0 : index
      %51 = vector.load %arg8[%c0_27, %c0_28] : memref<1x128xf32, #tpu.memory_space<vmem>>, vector<1x128xf32>
      %52 = vector.broadcast %51 : vector<1x128xf32> to vector<256x128xf32>
      %53 = arith.addf %50, %52 : vector<256x128xf32>
      %c0_29 = arith.constant 0 : index
      %c0_30 = arith.constant 0 : index
      %54 = vector.load %arg9[%c0_29, %c0_30] : memref<256x128xf32, #tpu.memory_space<vmem>>, vector<256x128xf32>
      tpu.vector_store %arg9[%c0_29, %c0_30], %53 {strides = array<i32>} : memref<256x128xf32, #tpu.memory_space<vmem>>, vector<256x128xf32>,
    } else {
    }
    return
  }
  func.func @transform_0(%arg0: i32, %arg1: i32) -> (i32, i32) {
    %c0_i32 = arith.constant 0 : i32
    %c0_i32_0 = arith.constant 0 : i32
    return %arg0, %c0_i32 : i32, i32
  }
  func.func @transform_1(%arg0: i32, %arg1: i32) -> (i32, i32) {
    %c0_i32 = arith.constant 0 : i32
    %c0_i32_0 = arith.constant 0 : i32
    return %c0_i32, %arg1 : i32, i32
  }
  func.func @transform_2(%arg0: i32, %arg1: i32) -> (i32, i32) {
    %c0_i32 = arith.constant 0 : i32
    %c0_i32_0 = arith.constant 0 : i32
    return %c0_i32, %arg1 : i32, i32
  }
  func.func @transform_3(%arg0: i32, %arg1: i32) -> (i32, i32) {
    %c0_i32 = arith.constant 0 : i32
    %c0_i32_0 = arith.constant 0 : i32
    return %arg1, %c0_i32 : i32, i32
  }
  func.func @transform_4(%arg0: i32, %arg1: i32) -> (i32, i32) {
    %c0_i32 = arith.constant 0 : i32
    %c0_i32_0 = arith.constant 0 : i32
    %c0_i32_1 = arith.constant 0 : i32
    return %c0_i32, %c0_i32_0 : i32, i32
  }
  func.func @transform_5(%arg0: i32, %arg1: i32) -> (i32, i32) {
    %c0_i32 = arith.constant 0 : i32
    %c0_i32_0 = arith.constant 0 : i32
    %c0_i32_1 = arith.constant 0 : i32
    return %c0_i32, %c0_i32_0 : i32, i32
  }
  func.func @transform_6(%arg0: i32, %arg1: i32) -> (i32, i32) {
    %c0_i32 = arith.constant 0 : i32
    %c0_i32_0 = arith.constant 0 : i32
    %c0_i32_1 = arith.constant 0 : i32
    return %c0_i32, %c0_i32_0 : i32, i32
  }
  func.func @transform_7(%arg0: i32, %arg1: i32) -> (i32, i32) {
    %c0_i32 = arith.constant 0 : i32
    %c0_i32_0 = arith.constant 0 : i32
    return %arg0, %c0_i32 : i32, i32
  }
}

</mosaic_0001>

<llo_original>
// kernel: tpu_custom_call.1
$region0: #{tpu_custom_call.1}
  #allocation0 [shape = 'u32[]', space=smem, size = 0x4, offset = 0x4, fixed_abs, tag = 'smem constant byte address 0x4 - core index']
  #allocation1 [shape = 'u32[144,128]{1,0:T(1,128)}', space=vmem, size = 0x12000, scoped, tag = 'internal scratch']
  #allocation2 [shape = 'f32[256,128]{1,0:T(8,128)}', space=vmem, size = 0x20000, scoped, tag = 'scratch operand']
  %s0 = inlined_call_operand.hbm [shape: f32[256,128], index: 0, kind: input, shape index: {}]
  %s1 = inlined_call_operand.hbm [shape: f32[128,128], index: 1, kind: input, shape index: {}]
  %s2 = inlined_call_operand.hbm [shape: f32[1,128], index: 2, kind: input, shape index: {}]
  %s3 = inlined_call_operand.hbm [shape: f32[128,128], index: 3, kind: input, shape index: {}]
  %s4 = inlined_call_operand.hbm [shape: f32[1,128], index: 4, kind: input, shape index: {}]
  %s5 = inlined_call_operand.hbm [shape: f32[1,128], index: 5, kind: input, shape index: {}]
  %s6 = inlined_call_operand.hbm [shape: f32[1,128], index: 6, kind: input, shape index: {}]
  %s7 = inlined_call_operand.hbm [shape: f32[256,128], index: 7, kind: output, shape index: {}]
  %s8 = sld [smem:[#allocation0]]
  $region74: #{tpu_custom_call.1} parent=0
    _
  %s10 = ssub.s32 1, %s8
  %s11 = scalar_select 0, %s10, %s8
  $region1: #{tpu_custom_call.1} parent=0
    #allocation3 [shape = 'u8[131072]{0}', space=vmem, size = 0x20000, scoped, tag = 'input window, operand 0, single buffered']
    #allocation4 [shape = 's32[1]{0}', space=sflag, size = 0x4, scoped, tag = 'scoped memory for tpu_custom_call.1']
    #allocation5 [shape = 's32[1]{0}', space=sflag, size = 0x4, scoped, tag = 'scoped memory for tpu_custom_call.1']
    #allocation6 [shape = 'u8[65536]{0}', space=vmem, size = 0x10000, scoped, tag = 'input window, operand 1, single buffered']
    #allocation7 [shape = 's32[1]{0}', space=sflag, size = 0x4, scoped, tag = 'scoped memory for tpu_custom_call.1']
    #allocation8 [shape = 'u8[512]{0}', space=vmem, size = 0x400, scoped, tag = 'input window, operand 2, single buffered']
    #allocation9 [shape = 'u8[65536]{0}', space=vmem, size = 0x10000, scoped, tag = 'input window, operand 3, single buffered']
    #allocation10 [shape = 's32[1]{0}', space=sflag, size = 0x4, scoped, tag = 'scoped memory for tpu_custom_call.1']
    #allocation11 [shape = 'u8[512]{0}', space=vmem, size = 0x400, scoped, tag = 'input window, operand 4, single buffered']
    #allocation12 [shape = 'u8[512]{0}', space=vmem, size = 0x400, scoped, tag = 'input window, operand 5, single buffered']
    #allocation13 [shape = 's32[1]{0}', space=sflag, size = 0x4, scoped, tag = 'scoped memory for tpu_custom_call.1']
    #allocation14 [shape = 'u8[512]{0}', space=vmem, size = 0x400, scoped, tag = 'input window, operand 6, single buffered']
    #allocation15 [shape = 'u8[131072]{0}', space=vmem, size = 0x20000, scoped, tag = 'output window, operand 0, single buffered']
    %12 = vsyncpa [#allocation4], 0
    %13 = vsyncpa [#allocation7], 0
    %14 = vsyncpa [#allocation10], 0
    %15 = vsyncpa [#allocation13], 0
    %16 = vsyncpa [#allocation5], 0
    // Predicated region
    $region2: #{tpu_custom_call.1} parent=1 // pred_check
      _
    $region3: #{tpu_custom_call.1} parent=1 // pred_check_branch
      %18 = sbr.rel (0) target = $region5
    $region4: #{tpu_custom_call.1} parent=1 // pred_region
      %s20 = ssub.s32 4096, 4096
      %21 = vsyncadd [#allocation4], %s20
      %s22 = sshll.u32 [#allocation3], 4
      %s23 = int_to_ptr.vmem [resolvable:$true] %s22
      %28 = dma.hbm_to_vmem [thread:$0]  %s0, 4096, %s23, [#allocation4], 128, 128, 8
    $region5: #{tpu_custom_call.1} parent=1 // pred_fallthru
      _
    // Predicated region
    $region6: #{tpu_custom_call.1} parent=1 // pred_check
      _
    $region7: #{tpu_custom_call.1} parent=1 // pred_check_branch
      %30 = sbr.rel (0) target = $region9
    $region8: #{tpu_custom_call.1} parent=1 // pred_region
      %s32 = ssub.s32 2048, 2048
      %33 = vsyncadd [#allocation7], %s32
      %s34 = sshll.u32 [#allocation6], 4
      %s35 = int_to_ptr.vmem [resolvable:$true] %s34
      %40 = dma.hbm_to_vmem [thread:$0]  %s1, 2048, %s35, [#allocation7], 128, 128, 8
    $region9: #{tpu_custom_call.1} parent=1 // pred_fallthru
      _
    // Predicated region
    $region10: #{tpu_custom_call.1} parent=1 // pred_check
      _
    $region11: #{tpu_custom_call.1} parent=1 // pred_check_branch
      %42 = sbr.rel (0) target = $region13
    $region12: #{tpu_custom_call.1} parent=1 // pred_region
      %s44 = ssub.s32 16, 16
      %45 = vsyncadd [#allocation7], %s44
      %s47 = sshll.u32 [#allocation8], 4
      %s48 = int_to_ptr.vmem [resolvable:$true] %s47
      %50 = dma.hbm_to_vmem [thread:$0]  %s2, 16, %s48, [#allocation7]
    $region13: #{tpu_custom_call.1} parent=1 // pred_fallthru
      _
    // Predicated region
    $region14: #{tpu_custom_call.1} parent=1 // pred_check
      _
    $region15: #{tpu_custom_call.1} parent=1 // pred_check_branch
      %52 = sbr.rel (0) target = $region17
    $region16: #{tpu_custom_call.1} parent=1 // pred_region
      %s54 = ssub.s32 2048, 2048
      %55 = vsyncadd [#allocation10], %s54
      %s56 = sshll.u32 [#allocation9], 4
      %s57 = int_to_ptr.vmem [resolvable:$true] %s56
      %62 = dma.hbm_to_vmem [thread:$0]  %s3, 2048, %s57, [#allocation10], 128, 128, 8
    $region17: #{tpu_custom_call.1} parent=1 // pred_fallthru
      _
    // Predicated region
    $region18: #{tpu_custom_call.1} parent=1 // pred_check
      _
    $region19: #{tpu_custom_call.1} parent=1 // pred_check_branch
      %64 = sbr.rel (0) target = $region21
    $region20: #{tpu_custom_call.1} parent=1 // pred_region
      %s66 = ssub.s32 16, 16
      %67 = vsyncadd [#allocation10], %s66
      %s69 = sshll.u32 [#allocation11], 4
      %s70 = int_to_ptr.vmem [resolvable:$true] %s69
      %72 = dma.hbm_to_vmem [thread:$0]  %s4, 16, %s70, [#allocation10]
    $region21: #{tpu_custom_call.1} parent=1 // pred_fallthru
      _
    // Predicated region
    $region22: #{tpu_custom_call.1} parent=1 // pred_check
      _
    $region23: #{tpu_custom_call.1} parent=1 // pred_check_branch
      %74 = sbr.rel (0) target = $region25
    $region24: #{tpu_custom_call.1} parent=1 // pred_region
      %s76 = ssub.s32 16, 16
      %77 = vsyncadd [#allocation13], %s76
      %s79 = sshll.u32 [#allocation12], 4
      %s80 = int_to_ptr.vmem [resolvable:$true] %s79
      %82 = dma.hbm_to_vmem [thread:$0]  %s5, 16, %s80, [#allocation13]
    $region25: #{tpu_custom_call.1} parent=1 // pred_fallthru
      _
    // Predicated region
    $region26: #{tpu_custom_call.1} parent=1 // pred_check
      _
    $region27: #{tpu_custom_call.1} parent=1 // pred_check_branch
      %84 = sbr.rel (0) target = $region29
    $region28: #{tpu_custom_call.1} parent=1 // pred_region
      %s86 = ssub.s32 16, 16
      %87 = vsyncadd [#allocation13], %s86
      %s89 = sshll.u32 [#allocation14], 4
      %s90 = int_to_ptr.vmem [resolvable:$true] %s89
      %92 = dma.hbm_to_vmem [thread:$0]  %s6, 16, %s90, [#allocation13]
    $region29: #{tpu_custom_call.1} parent=1 // pred_fallthru
      _
    // Predicated region
    $region30: #{tpu_custom_call.1} parent=1 // pred_check
      _
    $region31: #{tpu_custom_call.1} parent=1 // pred_check_branch
      %94 = sbr.rel (0) target = $region33
    $region32: #{tpu_custom_call.1} parent=1 // pred_region
      %95 = dma.done [#allocation4], 4096
    $region33: #{tpu_custom_call.1} parent=1 // pred_fallthru
      _
    // Predicated region
    $region34: #{tpu_custom_call.1} parent=1 // pred_check
      _
    $region35: #{tpu_custom_call.1} parent=1 // pred_check_branch
      %97 = sbr.rel (0) target = $region37
    $region36: #{tpu_custom_call.1} parent=1 // pred_region
      %98 = dma.done [#allocation7], 2048
    $region37: #{tpu_custom_call.1} parent=1 // pred_fallthru
      _
    // Predicated region
    $region38: #{tpu_custom_call.1} parent=1 // pred_check
      _
    $region39: #{tpu_custom_call.1} parent=1 // pred_check_branch
      %100 = sbr.rel (0) target = $region41
    $region40: #{tpu_custom_call.1} parent=1 // pred_region
      %101 = dma.done [#allocation7], 16
    $region41: #{tpu_custom_call.1} parent=1 // pred_fallthru
      _
    // Predicated region
    $region42: #{tpu_custom_call.1} parent=1 // pred_check
      _
    $region43: #{tpu_custom_call.1} parent=1 // pred_check_branch
      %103 = sbr.rel (0) target = $region45
    $region44: #{tpu_custom_call.1} parent=1 // pred_region
      %104 = dma.done [#allocation10], 2048
    $region45: #{tpu_custom_call.1} parent=1 // pred_fallthru
      _
    // Predicated region
    $region46: #{tpu_custom_call.1} parent=1 // pred_check
      _
    $region47: #{tpu_custom_call.1} parent=1 // pred_check_branch
      %106 = sbr.rel (0) target = $region49
    $region48: #{tpu_custom_call.1} parent=1 // pred_region
      %107 = dma.done [#allocation10], 16
    $region49: #{tpu_custom_call.1} parent=1 // pred_fallthru
      _
    // Predicated region
    $region50: #{tpu_custom_call.1} parent=1 // pred_check
      _
    $region51: #{tpu_custom_call.1} parent=1 // pred_check_branch
      %109 = sbr.rel (0) target = $region53
    $region52: #{tpu_custom_call.1} parent=1 // pred_region
      %110 = dma.done [#allocation13], 16
    $region53: #{tpu_custom_call.1} parent=1 // pred_fallthru
      _
    // Predicated region
    $region54: #{tpu_custom_call.1} parent=1 // pred_check
      _
    $region55: #{tpu_custom_call.1} parent=1 // pred_check_branch
      %112 = sbr.rel (0) target = $region57
    $region56: #{tpu_custom_call.1} parent=1 // pred_region
      %113 = dma.done [#allocation13], 16
    $region57: #{tpu_custom_call.1} parent=1 // pred_fallthru
      _
    %p114 = scmp.eq.s32.totalorder 0, 0
    // Predicated region
    $region58: #{tpu_custom_call.1} parent=1 // pred_check
      %p115 = pneg %p114
    $region59: #{tpu_custom_call.1} parent=1 // pred_check_branch
      %117 = sbr.rel (%p115) target = $region61
    $region60: #{tpu_custom_call.1} parent=1 // pred_region
      %118 = vst [vmem:[#allocation2] sm:$0xff] 0.0
      %119 = vst [vmem:[#allocation2 + $0x8] sm:$0xff] 0.0
      %120 = vst [vmem:[#allocation2 + $0x10] sm:$0xff] 0.0
      %121 = vst [vmem:[#allocation2 + $0x18] sm:$0xff] 0.0
      %122 = vst [vmem:[#allocation2 + $0x20] sm:$0xff] 0.0
      %123 = vst [vmem:[#allocation2 + $0x28] sm:$0xff] 0.0
      %124 = vst [vmem:[#allocation2 + $0x30] sm:$0xff] 0.0
      %125 = vst [vmem:[#allocation2 + $0x38] sm:$0xff] 0.0
      %126 = vst [vmem:[#allocation2 + $0x40] sm:$0xff] 0.0
      %127 = vst [vmem:[#allocation2 + $0x48] sm:$0xff] 0.0
      %128 = vst [vmem:[#allocation2 + $0x50] sm:$0xff] 0.0
      %129 = vst [vmem:[#allocation2 + $0x58] sm:$0xff] 0.0
      %130 = vst [vmem:[#allocation2 + $0x60] sm:$0xff] 0.0
      %131 = vst [vmem:[#allocation2 + $0x68] sm:$0xff] 0.0
      %132 = vst [vmem:[#allocation2 + $0x70] sm:$0xff] 0.0
      %133 = vst [vmem:[#allocation2 + $0x78] sm:$0xff] 0.0
      %134 = vst [vmem:[#allocation2 + $0x80] sm:$0xff] 0.0
      %135 = vst [vmem:[#allocation2 + $0x88] sm:$0xff] 0.0
      %136 = vst [vmem:[#allocation2 + $0x90] sm:$0xff] 0.0
      %137 = vst [vmem:[#allocation2 + $0x98] sm:$0xff] 0.0
      %138 = vst [vmem:[#allocation2 + $0xa0] sm:$0xff] 0.0
      %139 = vst [vmem:[#allocation2 + $0xa8] sm:$0xff] 0.0
      %140 = vst [vmem:[#allocation2 + $0xb0] sm:$0xff] 0.0
      %141 = vst [vmem:[#allocation2 + $0xb8] sm:$0xff] 0.0
      %142 = vst [vmem:[#allocation2 + $0xc0] sm:$0xff] 0.0
      %143 = vst [vmem:[#allocation2 + $0xc8] sm:$0xff] 0.0
      %144 = vst [vmem:[#allocation2 + $0xd0] sm:$0xff] 0.0
      %145 = vst [vmem:[#allocation2 + $0xd8] sm:$0xff] 0.0
      %146 = vst [vmem:[#allocation2 + $0xe0] sm:$0xff] 0.0
      %147 = vst [vmem:[#allocation2 + $0xe8] sm:$0xff] 0.0
      %148 = vst [vmem:[#allocation2 + $0xf0] sm:$0xff] 0.0
      %149 = vst [vmem:[#allocation2 + $0xf8] sm:$0xff] 0.0
    $region61: #{tpu_custom_call.1} parent=1 // pred_fallthru
      _
    %v150 = vld [vmem:[#allocation3] sm:$0xff]
    %v151 = vld [vmem:[#allocation3 + $0x8] sm:$0xff]
    %v152 = vld [vmem:[#allocation3 + $0x10] sm:$0xff]
    %v153 = vld [vmem:[#allocation3 + $0x18] sm:$0xff]
    %v154 = vld [vmem:[#allocation3 + $0x20] sm:$0xff]
    %v155 = vld [vmem:[#allocation3 + $0x28] sm:$0xff]
    %v156 = vld [vmem:[#allocation3 + $0x30] sm:$0xff]
    %v157 = vld [vmem:[#allocation3 + $0x38] sm:$0xff]
    %v158 = vld [vmem:[#allocation3 + $0x40] sm:$0xff]
    %v159 = vld [vmem:[#allocation3 + $0x48] sm:$0xff]
    %v160 = vld [vmem:[#allocation3 + $0x50] sm:$0xff]
    %v161 = vld [vmem:[#allocation3 + $0x58] sm:$0xff]
    %v162 = vld [vmem:[#allocation3 + $0x60] sm:$0xff]
    %v163 = vld [vmem:[#allocation3 + $0x68] sm:$0xff]
    %v164 = vld [vmem:[#allocation3 + $0x70] sm:$0xff]
    %v165 = vld [vmem:[#allocation3 + $0x78] sm:$0xff]
    %v166 = vld [vmem:[#allocation3 + $0x80] sm:$0xff]
    %v167 = vld [vmem:[#allocation3 + $0x88] sm:$0xff]
    %v168 = vld [vmem:[#allocation3 + $0x90] sm:$0xff]
    %v169 = vld [vmem:[#allocation3 + $0x98] sm:$0xff]
    %v170 = vld [vmem:[#allocation3 + $0xa0] sm:$0xff]
    %v171 = vld [vmem:[#allocation3 + $0xa8] sm:$0xff]
    %v172 = vld [vmem:[#allocation3 + $0xb0] sm:$0xff]
    %v173 = vld [vmem:[#allocation3 + $0xb8] sm:$0xff]
    %v174 = vld [vmem:[#allocation3 + $0xc0] sm:$0xff]
    %v175 = vld [vmem:[#allocation3 + $0xc8] sm:$0xff]
    %v176 = vld [vmem:[#allocation3 + $0xd0] sm:$0xff]
    %v177 = vld [vmem:[#allocation3 + $0xd8] sm:$0xff]
    %v178 = vld [vmem:[#allocation3 + $0xe0] sm:$0xff]
    %v179 = vld [vmem:[#allocation3 + $0xe8] sm:$0xff]
    %v180 = vld [vmem:[#allocation3 + $0xf0] sm:$0xff]
    %v181 = vld [vmem:[#allocation3 + $0xf8] sm:$0xff]
    %v182 = vld [vmem:[#allocation6] sm:$0xff]
    %v183 = vld [vmem:[#allocation6 + $0x8] sm:$0xff]
    %v184 = vld [vmem:[#allocation6 + $0x10] sm:$0xff]
    %v185 = vld [vmem:[#allocation6 + $0x18] sm:$0xff]
    %v186 = vld [vmem:[#allocation6 + $0x20] sm:$0xff]
    %v187 = vld [vmem:[#allocation6 + $0x28] sm:$0xff]
    %v188 = vld [vmem:[#allocation6 + $0x30] sm:$0xff]
    %v189 = vld [vmem:[#allocation6 + $0x38] sm:$0xff]
    %v190 = vld [vmem:[#allocation6 + $0x40] sm:$0xff]
    %v191 = vld [vmem:[#allocation6 + $0x48] sm:$0xff]
    %v192 = vld [vmem:[#allocation6 + $0x50] sm:$0xff]
    %v193 = vld [vmem:[#allocation6 + $0x58] sm:$0xff]
    %v194 = vld [vmem:[#allocation6 + $0x60] sm:$0xff]
    %v195 = vld [vmem:[#allocation6 + $0x68] sm:$0xff]
    %v196 = vld [vmem:[#allocation6 + $0x70] sm:$0xff]
    %v197 = vld [vmem:[#allocation6 + $0x78] sm:$0xff]
    %v198 = vld [vmem:[#allocation8] sm:$0x1]
    %v200 = vlaneseq
    %v201 = vshrl.u32 %v200, 7
    %v202 = vsub.s32 0, %v201
    %v203 = vrot.slane %v198, %v202
    %205 = vmatprep.subr.mxu0 0.0
    %206 = vmatpush1.msra.mxu0 %v182
    %207 = vmatprep.subr.mxu0 0.0
    %208 = vmatpush1.msra.mxu0 %v183
    %209 = vmatprep.subr.mxu0 0.0
    %210 = vmatpush1.msra.mxu0 %v184
    %211 = vmatprep.subr.mxu0 0.0
    %212 = vmatpush1.msra.mxu0 %v185
    %213 = vmatprep.subr.mxu0 0.0
    %214 = vmatpush1.msra.mxu0 %v186
    %215 = vmatprep.subr.mxu0 0.0
    %216 = vmatpush1.msra.mxu0 %v187
    %217 = vmatprep.subr.mxu0 0.0
    %218 = vmatpush1.msra.mxu0 %v188
    %219 = vmatprep.subr.mxu0 0.0
    %220 = vmatpush1.msra.mxu0 %v189
    %221 = vmatprep.subr.mxu0 0.0
    %222 = vmatpush1.msra.mxu0 %v190
    %223 = vmatprep.subr.mxu0 0.0
    %224 = vmatpush1.msra.mxu0 %v191
    %225 = vmatprep.subr.mxu0 0.0
    %226 = vmatpush1.msra.mxu0 %v192
    %227 = vmatprep.subr.mxu0 0.0
    %228 = vmatpush1.msra.mxu0 %v193
    %229 = vmatprep.subr.mxu0 0.0
    %230 = vmatpush1.msra.mxu0 %v194
    %231 = vmatprep.subr.mxu0 0.0
    %232 = vmatpush1.msra.mxu0 %v195
    %233 = vmatprep.subr.mxu0 0.0
    %234 = vmatpush1.msra.mxu0 %v196
    %235 = vmatprep.subr.mxu0 0.0
    %236 = vmatpush1.msra.mxu0 %v197
    %237 = vmatprep.subr.mxu0 0.0
    %238 = vmatpush1.msra.mxu0 0.0
    %239 = vmatprep.subr.mxu0 0.0
    %240 = vmatpush1.msra.mxu0 0.0
    %241 = vmatprep.subr.mxu0 0.0
    %242 = vmatpush1.msra.mxu0 0.0
    %243 = vmatprep.subr.mxu0 0.0
    %244 = vmatpush1.msra.mxu0 0.0
    %245 = vmatprep.subr.mxu0 0.0
    %246 = vmatpush1.msra.mxu0 0.0
    %247 = vmatprep.subr.mxu0 0.0
    %248 = vmatpush1.msra.mxu0 0.0
    %249 = vmatprep.subr.mxu0 0.0
    %250 = vmatpush1.msra.mxu0 0.0
    %251 = vmatprep.subr.mxu0 0.0
    %252 = vmatpush1.msra.mxu0 0.0
    %253 = vmatprep.subr.mxu0 0.0
    %254 = vmatpush1.msra.mxu0 0.0
    %255 = vmatprep.subr.mxu0 0.0
    %256 = vmatpush1.msra.mxu0 0.0
    %257 = vmatprep.subr.mxu0 0.0
    %258 = vmatpush1.msra.mxu0 0.0
    %259 = vmatprep.subr.mxu0 0.0
    %260 = vmatpush1.msra.mxu0 0.0
    %261 = vmatprep.subr.mxu0 0.0
    %262 = vmatpush1.msra.mxu0 0.0
    %263 = vmatprep.subr.mxu0 0.0
    %264 = vmatpush1.msra.mxu0 0.0
    %265 = vmatprep.subr.mxu0 0.0
    %266 = vmatpush1.msra.mxu0 0.0
    %267 = vmatprep.subr.mxu0 0.0
    %268 = vmatpush1.msra.mxu0 0.0
    %269 = vmatprep.mubr.f32.mxu0 0.0
    %270 = vmatmul.mubr.f32.gmra.mrb[0].mxu0 %v150
    %v271 = vpop.f32.mrb[0].mxu0
    %v272 = vadd.f32 %v203, %v271
    %v273 = vpop.f32.mrb[0].mxu0
    %274 = vmatprep.mubr.f32.mxu0 0.0
    %275 = vmatmul.mubr.f32.gmra.mrb[0].mxu0 %v151
    %v276 = vpop.f32.mrb[0].mxu0
    %v277 = vadd.f32 %v203, %v276
    %v278 = vpop.f32.mrb[0].mxu0
    %279 = vmatprep.mubr.f32.mxu0 0.0
    %280 = vmatmul.mubr.f32.gmra.mrb[0].mxu0 %v152
    %v281 = vpop.f32.mrb[0].mxu0
    %v282 = vadd.f32 %v203, %v281
    %v283 = vpop.f32.mrb[0].mxu0
    %284 = vmatprep.mubr.f32.mxu0 0.0
    %285 = vmatmul.mubr.f32.gmra.mrb[0].mxu0 %v153
    %v286 = vpop.f32.mrb[0].mxu0
    %v287 = vadd.f32 %v203, %v286
    %v288 = vpop.f32.mrb[0].mxu0
    %289 = vmatprep.mubr.f32.mxu0 0.0
    %290 = vmatmul.mubr.f32.gmra.mrb[0].mxu0 %v154
    %v291 = vpop.f32.mrb[0].mxu0
    %v292 = vadd.f32 %v203, %v291
    %v293 = vpop.f32.mrb[0].mxu0
    %294 = vmatprep.mubr.f32.mxu0 0.0
    %295 = vmatmul.mubr.f32.gmra.mrb[0].mxu0 %v155
    %v296 = vpop.f32.mrb[0].mxu0
    %v297 = vadd.f32 %v203, %v296
    %v298 = vpop.f32.mrb[0].mxu0
    %299 = vmatprep.mubr.f32.mxu0 0.0
    %300 = vmatmul.mubr.f32.gmra.mrb[0].mxu0 %v156
    %v301 = vpop.f32.mrb[0].mxu0
    %v302 = vadd.f32 %v203, %v301
    %v303 = vpop.f32.mrb[0].mxu0
    %304 = vmatprep.mubr.f32.mxu0 0.0
    %305 = vmatmul.mubr.f32.gmra.mrb[0].mxu0 %v157
    %v306 = vpop.f32.mrb[0].mxu0
    %v307 = vadd.f32 %v203, %v306
    %v308 = vpop.f32.mrb[0].mxu0
    %309 = vmatprep.mubr.f32.mxu0 0.0
    %310 = vmatmul.mubr.f32.gmra.mrb[0].mxu0 %v158
    %v311 = vpop.f32.mrb[0].mxu0
    %v312 = vadd.f32 %v203, %v311
    %v313 = vpop.f32.mrb[0].mxu0
    %314 = vmatprep.mubr.f32.mxu0 0.0
    %315 = vmatmul.mubr.f32.gmra.mrb[0].mxu0 %v159
    %v316 = vpop.f32.mrb[0].mxu0
    %v317 = vadd.f32 %v203, %v316
    %v318 = vpop.f32.mrb[0].mxu0
    %319 = vmatprep.mubr.f32.mxu0 0.0
    %320 = vmatmul.mubr.f32.gmra.mrb[0].mxu0 %v160
    %v321 = vpop.f32.mrb[0].mxu0
    %v322 = vadd.f32 %v203, %v321
    %v323 = vpop.f32.mrb[0].mxu0
    %324 = vmatprep.mubr.f32.mxu0 0.0
    %325 = vmatmul.mubr.f32.gmra.mrb[0].mxu0 %v161
    %v326 = vpop.f32.mrb[0].mxu0
    %v327 = vadd.f32 %v203, %v326
    %v328 = vpop.f32.mrb[0].mxu0
    %329 = vmatprep.mubr.f32.mxu0 0.0
    %330 = vmatmul.mubr.f32.gmra.mrb[0].mxu0 %v162
    %v331 = vpop.f32.mrb[0].mxu0
    %v332 = vadd.f32 %v203, %v331
    %v333 = vpop.f32.mrb[0].mxu0
    %334 = vmatprep.mubr.f32.mxu0 0.0
    %335 = vmatmul.mubr.f32.gmra.mrb[0].mxu0 %v163
    %v336 = vpop.f32.mrb[0].mxu0
    %v337 = vadd.f32 %v203, %v336
    %v338 = vpop.f32.mrb[0].mxu0
    %339 = vmatprep.mubr.f32.mxu0 0.0
    %340 = vmatmul.mubr.f32.gmra.mrb[0].mxu0 %v164
    %v341 = vpop.f32.mrb[0].mxu0
    %v342 = vadd.f32 %v203, %v341
    %v343 = vpop.f32.mrb[0].mxu0
    %344 = vmatprep.mubr.f32.mxu0 0.0
    %345 = vmatmul.mubr.f32.gmra.mrb[0].mxu0 %v165
    %v346 = vpop.f32.mrb[0].mxu0
    %v347 = vadd.f32 %v203, %v346
    %v348 = vpop.f32.mrb[0].mxu0
    %349 = vmatprep.mubr.f32.mxu0 0.0
    %350 = vmatmul.mubr.f32.gmra.mrb[0].mxu0 %v166
    %v351 = vpop.f32.mrb[0].mxu0
    %v352 = vadd.f32 %v203, %v351
    %v353 = vpop.f32.mrb[0].mxu0
    %354 = vmatprep.mubr.f32.mxu0 0.0
    %355 = vmatmul.mubr.f32.gmra.mrb[0].mxu0 %v167
    %v356 = vpop.f32.mrb[0].mxu0
    %v357 = vadd.f32 %v203, %v356
    %v358 = vpop.f32.mrb[0].mxu0
    %359 = vmatprep.mubr.f32.mxu0 0.0
    %360 = vmatmul.mubr.f32.gmra.mrb[0].mxu0 %v168
    %v361 = vpop.f32.mrb[0].mxu0
    %v362 = vadd.f32 %v203, %v361
    %v363 = vpop.f32.mrb[0].mxu0
    %364 = vmatprep.mubr.f32.mxu0 0.0
    %365 = vmatmul.mubr.f32.gmra.mrb[0].mxu0 %v169
    %v366 = vpop.f32.mrb[0].mxu0
    %v367 = vadd.f32 %v203, %v366
    %v368 = vpop.f32.mrb[0].mxu0
    %369 = vmatprep.mubr.f32.mxu0 0.0
    %370 = vmatmul.mubr.f32.gmra.mrb[0].mxu0 %v170
    %v371 = vpop.f32.mrb[0].mxu0
    %v372 = vadd.f32 %v203, %v371
    %v373 = vpop.f32.mrb[0].mxu0
    %374 = vmatprep.mubr.f32.mxu0 0.0
    %375 = vmatmul.mubr.f32.gmra.mrb[0].mxu0 %v171
    %v376 = vpop.f32.mrb[0].mxu0
    %v377 = vadd.f32 %v203, %v376
    %v378 = vpop.f32.mrb[0].mxu0
    %379 = vmatprep.mubr.f32.mxu0 0.0
    %380 = vmatmul.mubr.f32.gmra.mrb[0].mxu0 %v172
    %v381 = vpop.f32.mrb[0].mxu0
    %v382 = vadd.f32 %v203, %v381
    %v383 = vpop.f32.mrb[0].mxu0
    %384 = vmatprep.mubr.f32.mxu0 0.0
    %385 = vmatmul.mubr.f32.gmra.mrb[0].mxu0 %v173
    %v386 = vpop.f32.mrb[0].mxu0
    %v387 = vadd.f32 %v203, %v386
    %v388 = vpop.f32.mrb[0].mxu0
    %389 = vmatprep.mubr.f32.mxu0 0.0
    %390 = vmatmul.mubr.f32.gmra.mrb[0].mxu0 %v174
    %v391 = vpop.f32.mrb[0].mxu0
    %v392 = vadd.f32 %v203, %v391
    %v393 = vpop.f32.mrb[0].mxu0
    %394 = vmatprep.mubr.f32.mxu0 0.0
    %395 = vmatmul.mubr.f32.gmra.mrb[0].mxu0 %v175
    %v396 = vpop.f32.mrb[0].mxu0
    %v397 = vadd.f32 %v203, %v396
    %v398 = vpop.f32.mrb[0].mxu0
    %399 = vmatprep.mubr.f32.mxu0 0.0
    %400 = vmatmul.mubr.f32.gmra.mrb[0].mxu0 %v176
    %v401 = vpop.f32.mrb[0].mxu0
    %v402 = vadd.f32 %v203, %v401
    %v403 = vpop.f32.mrb[0].mxu0
    %404 = vmatprep.mubr.f32.mxu0 0.0
    %405 = vmatmul.mubr.f32.gmra.mrb[0].mxu0 %v177
    %v406 = vpop.f32.mrb[0].mxu0
    %v407 = vadd.f32 %v203, %v406
    %v408 = vpop.f32.mrb[0].mxu0
    %409 = vmatprep.mubr.f32.mxu0 0.0
    %410 = vmatmul.mubr.f32.gmra.mrb[0].mxu0 %v178
    %v411 = vpop.f32.mrb[0].mxu0
    %v412 = vadd.f32 %v203, %v411
    %v413 = vpop.f32.mrb[0].mxu0
    %414 = vmatprep.mubr.f32.mxu0 0.0
    %415 = vmatmul.mubr.f32.gmra.mrb[0].mxu0 %v179
    %v416 = vpop.f32.mrb[0].mxu0
    %v417 = vadd.f32 %v203, %v416
    %v418 = vpop.f32.mrb[0].mxu0
    %419 = vmatprep.mubr.f32.mxu0 0.0
    %420 = vmatmul.mubr.f32.gmra.mrb[0].mxu0 %v180
    %v421 = vpop.f32.mrb[0].mxu0
    %v422 = vadd.f32 %v203, %v421
    %v423 = vpop.f32.mrb[0].mxu0
    %424 = vmatprep.mubr.f32.mxu0 0.0
    %425 = vmatmul.mubr.f32.gmra.mrb[0].mxu0 %v181
    %v426 = vpop.f32.mrb[0].mxu0
    %v427 = vadd.f32 %v203, %v426
    %v428 = vpop.f32.mrb[0].mxu0
    %429 = vdwg.mxu0
    %v430 = vmax.f32 %v272, 0.0
    %v431 = vmax.f32 %v277, 0.0
    %v432 = vmax.f32 %v282, 0.0
    %v433 = vmax.f32 %v287, 0.0
    %v434 = vmax.f32 %v292, 0.0
    %v435 = vmax.f32 %v297, 0.0
    %v436 = vmax.f32 %v302, 0.0
    %v437 = vmax.f32 %v307, 0.0
    %v438 = vmax.f32 %v312, 0.0
    %v439 = vmax.f32 %v317, 0.0
    %v440 = vmax.f32 %v322, 0.0
    %v441 = vmax.f32 %v327, 0.0
    %v442 = vmax.f32 %v332, 0.0
    %v443 = vmax.f32 %v337, 0.0
    %v444 = vmax.f32 %v342, 0.0
    %v445 = vmax.f32 %v347, 0.0
    %v446 = vmax.f32 %v352, 0.0
    %v447 = vmax.f32 %v357, 0.0
    %v448 = vmax.f32 %v362, 0.0
    %v449 = vmax.f32 %v367, 0.0
    %v450 = vmax.f32 %v372, 0.0
    %v451 = vmax.f32 %v377, 0.0
    %v452 = vmax.f32 %v382, 0.0
    %v453 = vmax.f32 %v387, 0.0
    %v454 = vmax.f32 %v392, 0.0
    %v455 = vmax.f32 %v397, 0.0
    %v456 = vmax.f32 %v402, 0.0
    %v457 = vmax.f32 %v407, 0.0
    %v458 = vmax.f32 %v412, 0.0
    %v459 = vmax.f32 %v417, 0.0
    %v460 = vmax.f32 %v422, 0.0
    %v461 = vmax.f32 %v427, 0.0
    %v462 = vld [vmem:[#allocation2] sm:$0xff]
    %v463 = vld [vmem:[#allocation2 + $0x8] sm:$0xff]
    %v464 = vld [vmem:[#allocation2 + $0x10] sm:$0xff]
    %v465 = vld [vmem:[#allocation2 + $0x18] sm:$0xff]
    %v466 = vld [vmem:[#allocation2 + $0x20] sm:$0xff]
    %v467 = vld [vmem:[#allocation2 + $0x28] sm:$0xff]
    %v468 = vld [vmem:[#allocation2 + $0x30] sm:$0xff]
    %v469 = vld [vmem:[#allocation2 + $0x38] sm:$0xff]
    %v470 = vld [vmem:[#allocation2 + $0x40] sm:$0xff]
    %v471 = vld [vmem:[#allocation2 + $0x48] sm:$0xff]
    %v472 = vld [vmem:[#allocation2 + $0x50] sm:$0xff]
    %v473 = vld [vmem:[#allocation2 + $0x58] sm:$0xff]
    %v474 = vld [vmem:[#allocation2 + $0x60] sm:$0xff]
    %v475 = vld [vmem:[#allocation2 + $0x68] sm:$0xff]
    %v476 = vld [vmem:[#allocation2 + $0x70] sm:$0xff]
    %v477 = vld [vmem:[#allocation2 + $0x78] sm:$0xff]
    %v478 = vld [vmem:[#allocation2 + $0x80] sm:$0xff]
    %v479 = vld [vmem:[#allocation2 + $0x88] sm:$0xff]
    %v480 = vld [vmem:[#allocation2 + $0x90] sm:$0xff]
    %v481 = vld [vmem:[#allocation2 + $0x98] sm:$0xff]
    %v482 = vld [vmem:[#allocation2 + $0xa0] sm:$0xff]
    %v483 = vld [vmem:[#allocation2 + $0xa8] sm:$0xff]
    %v484 = vld [vmem:[#allocation2 + $0xb0] sm:$0xff]
    %v485 = vld [vmem:[#allocation2 + $0xb8] sm:$0xff]
    %v486 = vld [vmem:[#allocation2 + $0xc0] sm:$0xff]
    %v487 = vld [vmem:[#allocation2 + $0xc8] sm:$0xff]
    %v488 = vld [vmem:[#allocation2 + $0xd0] sm:$0xff]
    %v489 = vld [vmem:[#allocation2 + $0xd8] sm:$0xff]
    %v490 = vld [vmem:[#allocation2 + $0xe0] sm:$0xff]
    %v491 = vld [vmem:[#allocation2 + $0xe8] sm:$0xff]
    %v492 = vld [vmem:[#allocation2 + $0xf0] sm:$0xff]
    %v493 = vld [vmem:[#allocation2 + $0xf8] sm:$0xff]
    %v494 = vld [vmem:[#allocation9] sm:$0xff]
    %v495 = vld [vmem:[#allocation9 + $0x8] sm:$0xff]
    %v496 = vld [vmem:[#allocation9 + $0x10] sm:$0xff]
    %v497 = vld [vmem:[#allocation9 + $0x18] sm:$0xff]
    %v498 = vld [vmem:[#allocation9 + $0x20] sm:$0xff]
    %v499 = vld [vmem:[#allocation9 + $0x28] sm:$0xff]
    %v500 = vld [vmem:[#allocation9 + $0x30] sm:$0xff]
    %v501 = vld [vmem:[#allocation9 + $0x38] sm:$0xff]
    %v502 = vld [vmem:[#allocation9 + $0x40] sm:$0xff]
    %v503 = vld [vmem:[#allocation9 + $0x48] sm:$0xff]
    %v504 = vld [vmem:[#allocation9 + $0x50] sm:$0xff]
    %v505 = vld [vmem:[#allocation9 + $0x58] sm:$0xff]
    %v506 = vld [vmem:[#allocation9 + $0x60] sm:$0xff]
    %v507 = vld [vmem:[#allocation9 + $0x68] sm:$0xff]
    %v508 = vld [vmem:[#allocation9 + $0x70] sm:$0xff]
    %v509 = vld [vmem:[#allocation9 + $0x78] sm:$0xff]
    %510 = vmatprep.subr.mxu0 0.0
    %511 = vmatpush1.msra.mxu0 %v494
    %512 = vmatprep.subr.mxu0 0.0
    %513 = vmatpush1.msra.mxu0 %v495
    %514 = vmatprep.subr.mxu0 0.0
    %515 = vmatpush1.msra.mxu0 %v496
    %516 = vmatprep.subr.mxu0 0.0
    %517 = vmatpush1.msra.mxu0 %v497
    %518 = vmatprep.subr.mxu0 0.0
    %519 = vmatpush1.msra.mxu0 %v498
    %520 = vmatprep.subr.mxu0 0.0
    %521 = vmatpush1.msra.mxu0 %v499
    %522 = vmatprep.subr.mxu0 0.0
    %523 = vmatpush1.msra.mxu0 %v500
    %524 = vmatprep.subr.mxu0 0.0
    %525 = vmatpush1.msra.mxu0 %v501
    %526 = vmatprep.subr.mxu0 0.0
    %527 = vmatpush1.msra.mxu0 %v502
    %528 = vmatprep.subr.mxu0 0.0
    %529 = vmatpush1.msra.mxu0 %v503
    %530 = vmatprep.subr.mxu0 0.0
    %531 = vmatpush1.msra.mxu0 %v504
    %532 = vmatprep.subr.mxu0 0.0
    %533 = vmatpush1.msra.mxu0 %v505
    %534 = vmatprep.subr.mxu0 0.0
    %535 = vmatpush1.msra.mxu0 %v506
    %536 = vmatprep.subr.mxu0 0.0
    %537 = vmatpush1.msra.mxu0 %v507
    %538 = vmatprep.subr.mxu0 0.0
    %539 = vmatpush1.msra.mxu0 %v508
    %540 = vmatprep.subr.mxu0 0.0
    %541 = vmatpush1.msra.mxu0 %v509
    %542 = vmatprep.subr.mxu0 0.0
    %543 = vmatpush1.msra.mxu0 0.0
    %544 = vmatprep.subr.mxu0 0.0
    %545 = vmatpush1.msra.mxu0 0.0
    %546 = vmatprep.subr.mxu0 0.0
    %547 = vmatpush1.msra.mxu0 0.0
    %548 = vmatprep.subr.mxu0 0.0
    %549 = vmatpush1.msra.mxu0 0.0
    %550 = vmatprep.subr.mxu0 0.0
    %551 = vmatpush1.msra.mxu0 0.0
    %552 = vmatprep.subr.mxu0 0.0
    %553 = vmatpush1.msra.mxu0 0.0
    %554 = vmatprep.subr.mxu0 0.0
    %555 = vmatpush1.msra.mxu0 0.0
    %556 = vmatprep.subr.mxu0 0.0
    %557 = vmatpush1.msra.mxu0 0.0
    %558 = vmatprep.subr.mxu0 0.0
    %559 = vmatpush1.msra.mxu0 0.0
    %560 = vmatprep.subr.mxu0 0.0
    %561 = vmatpush1.msra.mxu0 0.0
    %562 = vmatprep.subr.mxu0 0.0
    %563 = vmatpush1.msra.mxu0 0.0
    %564 = vmatprep.subr.mxu0 0.0
    %565 = vmatpush1.msra.mxu0 0.0
    %566 = vmatprep.subr.mxu0 0.0
    %567 = vmatpush1.msra.mxu0 0.0
    %568 = vmatprep.subr.mxu0 0.0
    %569 = vmatpush1.msra.mxu0 0.0
    %570 = vmatprep.subr.mxu0 0.0
    %571 = vmatpush1.msra.mxu0 0.0
    %572 = vmatprep.subr.mxu0 0.0
    %573 = vmatpush1.msra.mxu0 0.0
    %574 = vmatprep.mubr.f32.mxu0 0.0
    %575 = vmatmul.mubr.f32.gmra.mrb[0].mxu0 %v430
    %v576 = vpop.f32.mrb[0].mxu0
    %v577 = vadd.f32 0.0, %v576
    %v578 = vpop.f32.mrb[0].mxu0
    %579 = vmatprep.mubr.f32.mxu0 0.0
    %580 = vmatmul.mubr.f32.gmra.mrb[0].mxu0 %v431
    %v581 = vpop.f32.mrb[0].mxu0
    %v582 = vadd.f32 0.0, %v581
    %v583 = vpop.f32.mrb[0].mxu0
    %584 = vmatprep.mubr.f32.mxu0 0.0
    %585 = vmatmul.mubr.f32.gmra.mrb[0].mxu0 %v432
    %v586 = vpop.f32.mrb[0].mxu0
    %v587 = vadd.f32 0.0, %v586
    %v588 = vpop.f32.mrb[0].mxu0
    %589 = vmatprep.mubr.f32.mxu0 0.0
    %590 = vmatmul.mubr.f32.gmra.mrb[0].mxu0 %v433
    %v591 = vpop.f32.mrb[0].mxu0
    %v592 = vadd.f32 0.0, %v591
    %v593 = vpop.f32.mrb[0].mxu0
    %594 = vmatprep.mubr.f32.mxu0 0.0
    %595 = vmatmul.mubr.f32.gmra.mrb[0].mxu0 %v434
    %v596 = vpop.f32.mrb[0].mxu0
    %v597 = vadd.f32 0.0, %v596
    %v598 = vpop.f32.mrb[0].mxu0
    %599 = vmatprep.mubr.f32.mxu0 0.0
    %600 = vmatmul.mubr.f32.gmra.mrb[0].mxu0 %v435
    %v601 = vpop.f32.mrb[0].mxu0
    %v602 = vadd.f32 0.0, %v601
    %v603 = vpop.f32.mrb[0].mxu0
    %604 = vmatprep.mubr.f32.mxu0 0.0
    %605 = vmatmul.mubr.f32.gmra.mrb[0].mxu0 %v436
    %v606 = vpop.f32.mrb[0].mxu0
    %v607 = vadd.f32 0.0, %v606
    %v608 = vpop.f32.mrb[0].mxu0
    %609 = vmatprep.mubr.f32.mxu0 0.0
    %610 = vmatmul.mubr.f32.gmra.mrb[0].mxu0 %v437
    %v611 = vpop.f32.mrb[0].mxu0
    %v612 = vadd.f32 0.0, %v611
    %v613 = vpop.f32.mrb[0].mxu0
    %614 = vmatprep.mubr.f32.mxu0 0.0
    %615 = vmatmul.mubr.f32.gmra.mrb[0].mxu0 %v438
    %v616 = vpop.f32.mrb[0].mxu0
    %v617 = vadd.f32 0.0, %v616
    %v618 = vpop.f32.mrb[0].mxu0
    %619 = vmatprep.mubr.f32.mxu0 0.0
    %620 = vmatmul.mubr.f32.gmra.mrb[0].mxu0 %v439
    %v621 = vpop.f32.mrb[0].mxu0
    %v622 = vadd.f32 0.0, %v621
    %v623 = vpop.f32.mrb[0].mxu0
    %624 = vmatprep.mubr.f32.mxu0 0.0
    %625 = vmatmul.mubr.f32.gmra.mrb[0].mxu0 %v440
    %v626 = vpop.f32.mrb[0].mxu0
    %v627 = vadd.f32 0.0, %v626
    %v628 = vpop.f32.mrb[0].mxu0
    %629 = vmatprep.mubr.f32.mxu0 0.0
    %630 = vmatmul.mubr.f32.gmra.mrb[0].mxu0 %v441
    %v631 = vpop.f32.mrb[0].mxu0
    %v632 = vadd.f32 0.0, %v631
    %v633 = vpop.f32.mrb[0].mxu0
    %634 = vmatprep.mubr.f32.mxu0 0.0
    %635 = vmatmul.mubr.f32.gmra.mrb[0].mxu0 %v442
    %v636 = vpop.f32.mrb[0].mxu0
    %v637 = vadd.f32 0.0, %v636
    %v638 = vpop.f32.mrb[0].mxu0
    %639 = vmatprep.mubr.f32.mxu0 0.0
    %640 = vmatmul.mubr.f32.gmra.mrb[0].mxu0 %v443
    %v641 = vpop.f32.mrb[0].mxu0
    %v642 = vadd.f32 0.0, %v641
    %v643 = vpop.f32.mrb[0].mxu0
    %644 = vmatprep.mubr.f32.mxu0 0.0
    %645 = vmatmul.mubr.f32.gmra.mrb[0].mxu0 %v444
    %v646 = vpop.f32.mrb[0].mxu0
    %v647 = vadd.f32 0.0, %v646
    %v648 = vpop.f32.mrb[0].mxu0
    %649 = vmatprep.mubr.f32.mxu0 0.0
    %650 = vmatmul.mubr.f32.gmra.mrb[0].mxu0 %v445
    %v651 = vpop.f32.mrb[0].mxu0
    %v652 = vadd.f32 0.0, %v651
    %v653 = vpop.f32.mrb[0].mxu0
    %654 = vmatprep.mubr.f32.mxu0 0.0
    %655 = vmatmul.mubr.f32.gmra.mrb[0].mxu0 %v446
    %v656 = vpop.f32.mrb[0].mxu0
    %v657 = vadd.f32 0.0, %v656
    %v658 = vpop.f32.mrb[0].mxu0
    %659 = vmatprep.mubr.f32.mxu0 0.0
    %660 = vmatmul.mubr.f32.gmra.mrb[0].mxu0 %v447
    %v661 = vpop.f32.mrb[0].mxu0
    %v662 = vadd.f32 0.0, %v661
    %v663 = vpop.f32.mrb[0].mxu0
    %664 = vmatprep.mubr.f32.mxu0 0.0
    %665 = vmatmul.mubr.f32.gmra.mrb[0].mxu0 %v448
    %v666 = vpop.f32.mrb[0].mxu0
    %v667 = vadd.f32 0.0, %v666
    %v668 = vpop.f32.mrb[0].mxu0
    %669 = vmatprep.mubr.f32.mxu0 0.0
    %670 = vmatmul.mubr.f32.gmra.mrb[0].mxu0 %v449
    %v671 = vpop.f32.mrb[0].mxu0
    %v672 = vadd.f32 0.0, %v671
    %v673 = vpop.f32.mrb[0].mxu0
    %674 = vmatprep.mubr.f32.mxu0 0.0
    %675 = vmatmul.mubr.f32.gmra.mrb[0].mxu0 %v450
    %v676 = vpop.f32.mrb[0].mxu0
    %v677 = vadd.f32 0.0, %v676
    %v678 = vpop.f32.mrb[0].mxu0
    %679 = vmatprep.mubr.f32.mxu0 0.0
    %680 = vmatmul.mubr.f32.gmra.mrb[0].mxu0 %v451
    %v681 = vpop.f32.mrb[0].mxu0
    %v682 = vadd.f32 0.0, %v681
    %v683 = vpop.f32.mrb[0].mxu0
    %684 = vmatprep.mubr.f32.mxu0 0.0
    %685 = vmatmul.mubr.f32.gmra.mrb[0].mxu0 %v452
    %v686 = vpop.f32.mrb[0].mxu0
    %v687 = vadd.f32 0.0, %v686
    %v688 = vpop.f32.mrb[0].mxu0
    %689 = vmatprep.mubr.f32.mxu0 0.0
    %690 = vmatmul.mubr.f32.gmra.mrb[0].mxu0 %v453
    %v691 = vpop.f32.mrb[0].mxu0
    %v692 = vadd.f32 0.0, %v691
    %v693 = vpop.f32.mrb[0].mxu0
    %694 = vmatprep.mubr.f32.mxu0 0.0
    %695 = vmatmul.mubr.f32.gmra.mrb[0].mxu0 %v454
    %v696 = vpop.f32.mrb[0].mxu0
    %v697 = vadd.f32 0.0, %v696
    %v698 = vpop.f32.mrb[0].mxu0
    %699 = vmatprep.mubr.f32.mxu0 0.0
    %700 = vmatmul.mubr.f32.gmra.mrb[0].mxu0 %v455
    %v701 = vpop.f32.mrb[0].mxu0
    %v702 = vadd.f32 0.0, %v701
    %v703 = vpop.f32.mrb[0].mxu0
    %704 = vmatprep.mubr.f32.mxu0 0.0
    %705 = vmatmul.mubr.f32.gmra.mrb[0].mxu0 %v456
    %v706 = vpop.f32.mrb[0].mxu0
    %v707 = vadd.f32 0.0, %v706
    %v708 = vpop.f32.mrb[0].mxu0
    %709 = vmatprep.mubr.f32.mxu0 0.0
    %710 = vmatmul.mubr.f32.gmra.mrb[0].mxu0 %v457
    %v711 = vpop.f32.mrb[0].mxu0
    %v712 = vadd.f32 0.0, %v711
    %v713 = vpop.f32.mrb[0].mxu0
    %714 = vmatprep.mubr.f32.mxu0 0.0
    %715 = vmatmul.mubr.f32.gmra.mrb[0].mxu0 %v458
    %v716 = vpop.f32.mrb[0].mxu0
    %v717 = vadd.f32 0.0, %v716
    %v718 = vpop.f32.mrb[0].mxu0
    %719 = vmatprep.mubr.f32.mxu0 0.0
    %720 = vmatmul.mubr.f32.gmra.mrb[0].mxu0 %v459
    %v721 = vpop.f32.mrb[0].mxu0
    %v722 = vadd.f32 0.0, %v721
    %v723 = vpop.f32.mrb[0].mxu0
    %724 = vmatprep.mubr.f32.mxu0 0.0
    %725 = vmatmul.mubr.f32.gmra.mrb[0].mxu0 %v460
    %v726 = vpop.f32.mrb[0].mxu0
    %v727 = vadd.f32 0.0, %v726
    %v728 = vpop.f32.mrb[0].mxu0
    %729 = vmatprep.mubr.f32.mxu0 0.0
    %730 = vmatmul.mubr.f32.gmra.mrb[0].mxu0 %v461
    %v731 = vpop.f32.mrb[0].mxu0
    %v732 = vadd.f32 0.0, %v731
    %v733 = vpop.f32.mrb[0].mxu0
    %734 = vdwg.mxu0
    %v735 = vadd.f32 %v462, %v577
    %v736 = vadd.f32 %v463, %v582
    %v737 = vadd.f32 %v464, %v587
    %v738 = vadd.f32 %v465, %v592
    %v739 = vadd.f32 %v466, %v597
    %v740 = vadd.f32 %v467, %v602
    %v741 = vadd.f32 %v468, %v607
    %v742 = vadd.f32 %v469, %v612
    %v743 = vadd.f32 %v470, %v617
    %v744 = vadd.f32 %v471, %v622
    %v745 = vadd.f32 %v472, %v627
    %v746 = vadd.f32 %v473, %v632
    %v747 = vadd.f32 %v474, %v637
    %v748 = vadd.f32 %v475, %v642
    %v749 = vadd.f32 %v476, %v647
    %v750 = vadd.f32 %v477, %v652
    %v751 = vadd.f32 %v478, %v657
    %v752 = vadd.f32 %v479, %v662
    %v753 = vadd.f32 %v480, %v667
    %v754 = vadd.f32 %v481, %v672
    %v755 = vadd.f32 %v482, %v677
    %v756 = vadd.f32 %v483, %v682
    %v757 = vadd.f32 %v484, %v687
    %v758 = vadd.f32 %v485, %v692
    %v759 = vadd.f32 %v486, %v697
    %v760 = vadd.f32 %v487, %v702
    %v761 = vadd.f32 %v488, %v707
    %v762 = vadd.f32 %v489, %v712
    %v763 = vadd.f32 %v490, %v717
    %v764 = vadd.f32 %v491, %v722
    %v765 = vadd.f32 %v492, %v727
    %v766 = vadd.f32 %v493, %v732
    %767 = vst [vmem:[#allocation2] sm:$0xff] %v735
    %768 = vst [vmem:[#allocation2 + $0x8] sm:$0xff] %v736
    %769 = vst [vmem:[#allocation2 + $0x10] sm:$0xff] %v737
    %770 = vst [vmem:[#allocation2 + $0x18] sm:$0xff] %v738
    %771 = vst [vmem:[#allocation2 + $0x20] sm:$0xff] %v739
    %772 = vst [vmem:[#allocation2 + $0x28] sm:$0xff] %v740
    %773 = vst [vmem:[#allocation2 + $0x30] sm:$0xff] %v741
    %774 = vst [vmem:[#allocation2 + $0x38] sm:$0xff] %v742
    %775 = vst [vmem:[#allocation2 + $0x40] sm:$0xff] %v743
    %776 = vst [vmem:[#allocation2 + $0x48] sm:$0xff] %v744
    %777 = vst [vmem:[#allocation2 + $0x50] sm:$0xff] %v745
    %778 = vst [vmem:[#allocation2 + $0x58] sm:$0xff] %v746
    %779 = vst [vmem:[#allocation2 + $0x60] sm:$0xff] %v747
    %780 = vst [vmem:[#allocation2 + $0x68] sm:$0xff] %v748
    %781 = vst [vmem:[#allocation2 + $0x70] sm:$0xff] %v749
    %782 = vst [vmem:[#allocation2 + $0x78] sm:$0xff] %v750
    %783 = vst [vmem:[#allocation2 + $0x80] sm:$0xff] %v751
    %784 = vst [vmem:[#allocation2 + $0x88] sm:$0xff] %v752
    %785 = vst [vmem:[#allocation2 + $0x90] sm:$0xff] %v753
    %786 = vst [vmem:[#allocation2 + $0x98] sm:$0xff] %v754
    %787 = vst [vmem:[#allocation2 + $0xa0] sm:$0xff] %v755
    %788 = vst [vmem:[#allocation2 + $0xa8] sm:$0xff] %v756
    %789 = vst [vmem:[#allocation2 + $0xb0] sm:$0xff] %v757
    %790 = vst [vmem:[#allocation2 + $0xb8] sm:$0xff] %v758
    %791 = vst [vmem:[#allocation2 + $0xc0] sm:$0xff] %v759
    %792 = vst [vmem:[#allocation2 + $0xc8] sm:$0xff] %v760
    %793 = vst [vmem:[#allocation2 + $0xd0] sm:$0xff] %v761
    %794 = vst [vmem:[#allocation2 + $0xd8] sm:$0xff] %v762
    %795 = vst [vmem:[#allocation2 + $0xe0] sm:$0xff] %v763
    %796 = vst [vmem:[#allocation2 + $0xe8] sm:$0xff] %v764
    %797 = vst [vmem:[#allocation2 + $0xf0] sm:$0xff] %v765
    %798 = vst [vmem:[#allocation2 + $0xf8] sm:$0xff] %v766
    // Predicated region
    $region62: #{tpu_custom_call.1} parent=1 // pred_check
      %p799 = pneg %p114
    $region63: #{tpu_custom_call.1} parent=1 // pred_check_branch
      %801 = sbr.rel (%p799) target = $region65
    $region64: #{tpu_custom_call.1} parent=1 // pred_region
      %v802 = vld [vmem:[#allocation2] sm:$0xff]
      %v803 = vld [vmem:[#allocation2 + $0x8] sm:$0xff]
      %v804 = vld [vmem:[#allocation2 + $0x10] sm:$0xff]
      %v805 = vld [vmem:[#allocation2 + $0x18] sm:$0xff]
      %v806 = vld [vmem:[#allocation2 + $0x20] sm:$0xff]
      %v807 = vld [vmem:[#allocation2 + $0x28] sm:$0xff]
      %v808 = vld [vmem:[#allocation2 + $0x30] sm:$0xff]
      %v809 = vld [vmem:[#allocation2 + $0x38] sm:$0xff]
      %v810 = vld [vmem:[#allocation2 + $0x40] sm:$0xff]
      %v811 = vld [vmem:[#allocation2 + $0x48] sm:$0xff]
      %v812 = vld [vmem:[#allocation2 + $0x50] sm:$0xff]
      %v813 = vld [vmem:[#allocation2 + $0x58] sm:$0xff]
      %v814 = vld [vmem:[#allocation2 + $0x60] sm:$0xff]
      %v815 = vld [vmem:[#allocation2 + $0x68] sm:$0xff]
      %v816 = vld [vmem:[#allocation2 + $0x70] sm:$0xff]
      %v817 = vld [vmem:[#allocation2 + $0x78] sm:$0xff]
      %v818 = vld [vmem:[#allocation2 + $0x80] sm:$0xff]
      %v819 = vld [vmem:[#allocation2 + $0x88] sm:$0xff]
      %v820 = vld [vmem:[#allocation2 + $0x90] sm:$0xff]
      %v821 = vld [vmem:[#allocation2 + $0x98] sm:$0xff]
      %v822 = vld [vmem:[#allocation2 + $0xa0] sm:$0xff]
      %v823 = vld [vmem:[#allocation2 + $0xa8] sm:$0xff]
      %v824 = vld [vmem:[#allocation2 + $0xb0] sm:$0xff]
      %v825 = vld [vmem:[#allocation2 + $0xb8] sm:$0xff]
      %v826 = vld [vmem:[#allocation2 + $0xc0] sm:$0xff]
      %v827 = vld [vmem:[#allocation2 + $0xc8] sm:$0xff]
      %v828 = vld [vmem:[#allocation2 + $0xd0] sm:$0xff]
      %v829 = vld [vmem:[#allocation2 + $0xd8] sm:$0xff]
      %v830 = vld [vmem:[#allocation2 + $0xe0] sm:$0xff]
      %v831 = vld [vmem:[#allocation2 + $0xe8] sm:$0xff]
      %v832 = vld [vmem:[#allocation2 + $0xf0] sm:$0xff]
      %v833 = vld [vmem:[#allocation2 + $0xf8] sm:$0xff]
      %v834 = vld [vmem:[#allocation11] sm:$0x1]
      %v836 = vlaneseq
      %v837 = vshrl.u32 %v836, 7
      %v838 = vsub.s32 0, %v837
      %v839 = vrot.slane %v834, %v838
      %v841 = vadd.f32 %v802, %v839
      %v842 = vadd.f32 %v803, %v839
      %v843 = vadd.f32 %v804, %v839
      %v844 = vadd.f32 %v805, %v839
      %v845 = vadd.f32 %v806, %v839
      %v846 = vadd.f32 %v807, %v839
      %v847 = vadd.f32 %v808, %v839
      %v848 = vadd.f32 %v809, %v839
      %v849 = vadd.f32 %v810, %v839
      %v850 = vadd.f32 %v811, %v839
      %v851 = vadd.f32 %v812, %v839
      %v852 = vadd.f32 %v813, %v839
      %v853 = vadd.f32 %v814, %v839
      %v854 = vadd.f32 %v815, %v839
      %v855 = vadd.f32 %v816, %v839
      %v856 = vadd.f32 %v817, %v839
      %v857 = vadd.f32 %v818, %v839
      %v858 = vadd.f32 %v819, %v839
      %v859 = vadd.f32 %v820, %v839
      %v860 = vadd.f32 %v821, %v839
      %v861 = vadd.f32 %v822, %v839
      %v862 = vadd.f32 %v823, %v839
      %v863 = vadd.f32 %v824, %v839
      %v864 = vadd.f32 %v825, %v839
      %v865 = vadd.f32 %v826, %v839
      %v866 = vadd.f32 %v827, %v839
      %v867 = vadd.f32 %v828, %v839
      %v868 = vadd.f32 %v829, %v839
      %v869 = vadd.f32 %v830, %v839
      %v870 = vadd.f32 %v831, %v839
      %v871 = vadd.f32 %v832, %v839
      %v872 = vadd.f32 %v833, %v839
      %v873 = vlaneseq
      %v874 = vand.u32 %v873, 127
      %vm875 = vcmp.lt.s32.totalorder %v874, 32
      %v876 = vsel %vm875, 1, 0
      %v877 = vcvt.s32.f32 %v876
      %v878 = vmul.f32 %v841, %v877
      %v879 = vmul.f32 %v842, %v877
      %v880 = vmul.f32 %v843, %v877
      %v881 = vmul.f32 %v844, %v877
      %v882 = vmul.f32 %v845, %v877
      %v883 = vmul.f32 %v846, %v877
      %v884 = vmul.f32 %v847, %v877
      %v885 = vmul.f32 %v848, %v877
      %v886 = vmul.f32 %v849, %v877
      %v887 = vmul.f32 %v850, %v877
      %v888 = vmul.f32 %v851, %v877
      %v889 = vmul.f32 %v852, %v877
      %v890 = vmul.f32 %v853, %v877
      %v891 = vmul.f32 %v854, %v877
      %v892 = vmul.f32 %v855, %v877
      %v893 = vmul.f32 %v856, %v877
      %v894 = vmul.f32 %v857, %v877
      %v895 = vmul.f32 %v858, %v877
      %v896 = vmul.f32 %v859, %v877
      %v897 = vmul.f32 %v860, %v877
      %v898 = vmul.f32 %v861, %v877
      %v899 = vmul.f32 %v862, %v877
      %v900 = vmul.f32 %v863, %v877
      %v901 = vmul.f32 %v864, %v877
      %v902 = vmul.f32 %v865, %v877
      %v903 = vmul.f32 %v866, %v877
      %v904 = vmul.f32 %v867, %v877
      %v905 = vmul.f32 %v868, %v877
      %v906 = vmul.f32 %v869, %v877
      %v907 = vmul.f32 %v870, %v877
      %v908 = vmul.f32 %v871, %v877
      %v909 = vmul.f32 %v872, %v877
      %910 = vadd.xlane.f32.xlu0 %v878
      %v911 = vpop.xlane.xlu0 %910
      %912 = vadd.xlane.f32.xlu0 %v879
      %v913 = vpop.xlane.xlu0 %912
      %914 = vadd.xlane.f32.xlu0 %v880
      %v915 = vpop.xlane.xlu0 %914
      %916 = vadd.xlane.f32.xlu0 %v881
      %v917 = vpop.xlane.xlu0 %916
      %918 = vadd.xlane.f32.xlu0 %v882
      %v919 = vpop.xlane.xlu0 %918
      %920 = vadd.xlane.f32.xlu0 %v883
      %v921 = vpop.xlane.xlu0 %920
      %922 = vadd.xlane.f32.xlu0 %v884
      %v923 = vpop.xlane.xlu0 %922
      %924 = vadd.xlane.f32.xlu0 %v885
      %v925 = vpop.xlane.xlu0 %924
      %926 = vadd.xlane.f32.xlu0 %v886
      %v927 = vpop.xlane.xlu0 %926
      %928 = vadd.xlane.f32.xlu0 %v887
      %v929 = vpop.xlane.xlu0 %928
      %930 = vadd.xlane.f32.xlu0 %v888
      %v931 = vpop.xlane.xlu0 %930
      %932 = vadd.xlane.f32.xlu0 %v889
      %v933 = vpop.xlane.xlu0 %932
      %934 = vadd.xlane.f32.xlu0 %v890
      %v935 = vpop.xlane.xlu0 %934
      %936 = vadd.xlane.f32.xlu0 %v891
      %v937 = vpop.xlane.xlu0 %936
      %938 = vadd.xlane.f32.xlu0 %v892
      %v939 = vpop.xlane.xlu0 %938
      %940 = vadd.xlane.f32.xlu0 %v893
      %v941 = vpop.xlane.xlu0 %940
      %942 = vadd.xlane.f32.xlu0 %v894
      %v943 = vpop.xlane.xlu0 %942
      %944 = vadd.xlane.f32.xlu0 %v895
      %v945 = vpop.xlane.xlu0 %944
      %946 = vadd.xlane.f32.xlu0 %v896
      %v947 = vpop.xlane.xlu0 %946
      %948 = vadd.xlane.f32.xlu0 %v897
      %v949 = vpop.xlane.xlu0 %948
      %950 = vadd.xlane.f32.xlu0 %v898
      %v951 = vpop.xlane.xlu0 %950
      %952 = vadd.xlane.f32.xlu0 %v899
      %v953 = vpop.xlane.xlu0 %952
      %954 = vadd.xlane.f32.xlu0 %v900
      %v955 = vpop.xlane.xlu0 %954
      %956 = vadd.xlane.f32.xlu0 %v901
      %v957 = vpop.xlane.xlu0 %956
      %958 = vadd.xlane.f32.xlu0 %v902
      %v959 = vpop.xlane.xlu0 %958
      %960 = vadd.xlane.f32.xlu0 %v903
      %v961 = vpop.xlane.xlu0 %960
      %962 = vadd.xlane.f32.xlu0 %v904
      %v963 = vpop.xlane.xlu0 %962
      %964 = vadd.xlane.f32.xlu0 %v905
      %v965 = vpop.xlane.xlu0 %964
      %966 = vadd.xlane.f32.xlu0 %v906
      %v967 = vpop.xlane.xlu0 %966
      %968 = vadd.xlane.f32.xlu0 %v907
      %v969 = vpop.xlane.xlu0 %968
      %970 = vadd.xlane.f32.xlu0 %v908
      %v971 = vpop.xlane.xlu0 %970
      %972 = vadd.xlane.f32.xlu0 %v909
      %v973 = vpop.xlane.xlu0 %972
      %v974 = vmul.f32 %v911, 0.03125
      %v975 = vmul.f32 %v913, 0.03125
      %v976 = vmul.f32 %v915, 0.03125
      %v977 = vmul.f32 %v917, 0.03125
      %v978 = vmul.f32 %v919, 0.03125
      %v979 = vmul.f32 %v921, 0.03125
      %v980 = vmul.f32 %v923, 0.03125
      %v981 = vmul.f32 %v925, 0.03125
      %v982 = vmul.f32 %v927, 0.03125
      %v983 = vmul.f32 %v929, 0.03125
      %v984 = vmul.f32 %v931, 0.03125
      %v985 = vmul.f32 %v933, 0.03125
      %v986 = vmul.f32 %v935, 0.03125
      %v987 = vmul.f32 %v937, 0.03125
      %v988 = vmul.f32 %v939, 0.03125
      %v989 = vmul.f32 %v941, 0.03125
      %v990 = vmul.f32 %v943, 0.03125
      %v991 = vmul.f32 %v945, 0.03125
      %v992 = vmul.f32 %v947, 0.03125
      %v993 = vmul.f32 %v949, 0.03125
      %v994 = vmul.f32 %v951, 0.03125
      %v995 = vmul.f32 %v953, 0.03125
      %v996 = vmul.f32 %v955, 0.03125
      %v997 = vmul.f32 %v957, 0.03125
      %v998 = vmul.f32 %v959, 0.03125
      %v999 = vmul.f32 %v961, 0.03125
      %v1000 = vmul.f32 %v963, 0.03125
      %v1001 = vmul.f32 %v965, 0.03125
      %v1002 = vmul.f32 %v967, 0.03125
      %v1003 = vmul.f32 %v969, 0.03125
      %v1004 = vmul.f32 %v971, 0.03125
      %v1005 = vmul.f32 %v973, 0.03125
      %v1006 = vsub.f32 %v878, %v974
      %v1007 = vsub.f32 %v879, %v975
      %v1008 = vsub.f32 %v880, %v976
      %v1009 = vsub.f32 %v881, %v977
      %v1010 = vsub.f32 %v882, %v978
      %v1011 = vsub.f32 %v883, %v979
      %v1012 = vsub.f32 %v884, %v980
      %v1013 = vsub.f32 %v885, %v981
      %v1014 = vsub.f32 %v886, %v982
      %v1015 = vsub.f32 %v887, %v983
      %v1016 = vsub.f32 %v888, %v984
      %v1017 = vsub.f32 %v889, %v985
      %v1018 = vsub.f32 %v890, %v986
      %v1019 = vsub.f32 %v891, %v987
      %v1020 = vsub.f32 %v892, %v988
      %v1021 = vsub.f32 %v893, %v989
      %v1022 = vsub.f32 %v894, %v990
      %v1023 = vsub.f32 %v895, %v991
      %v1024 = vsub.f32 %v896, %v992
      %v1025 = vsub.f32 %v897, %v993
      %v1026 = vsub.f32 %v898, %v994
      %v1027 = vsub.f32 %v899, %v995
      %v1028 = vsub.f32 %v900, %v996
      %v1029 = vsub.f32 %v901, %v997
      %v1030 = vsub.f32 %v902, %v998
      %v1031 = vsub.f32 %v903, %v999
      %v1032 = vsub.f32 %v904, %v1000
      %v1033 = vsub.f32 %v905, %v1001
      %v1034 = vsub.f32 %v906, %v1002
      %v1035 = vsub.f32 %v907, %v1003
      %v1036 = vsub.f32 %v908, %v1004
      %v1037 = vsub.f32 %v909, %v1005
      %v1038 = vmul.f32 %v1006, %v877
      %v1039 = vmul.f32 %v1007, %v877
      %v1040 = vmul.f32 %v1008, %v877
      %v1041 = vmul.f32 %v1009, %v877
      %v1042 = vmul.f32 %v1010, %v877
      %v1043 = vmul.f32 %v1011, %v877
      %v1044 = vmul.f32 %v1012, %v877
      %v1045 = vmul.f32 %v1013, %v877
      %v1046 = vmul.f32 %v1014, %v877
      %v1047 = vmul.f32 %v1015, %v877
      %v1048 = vmul.f32 %v1016, %v877
      %v1049 = vmul.f32 %v1017, %v877
      %v1050 = vmul.f32 %v1018, %v877
      %v1051 = vmul.f32 %v1019, %v877
      %v1052 = vmul.f32 %v1020, %v877
      %v1053 = vmul.f32 %v1021, %v877
      %v1054 = vmul.f32 %v1022, %v877
      %v1055 = vmul.f32 %v1023, %v877
      %v1056 = vmul.f32 %v1024, %v877
      %v1057 = vmul.f32 %v1025, %v877
      %v1058 = vmul.f32 %v1026, %v877
      %v1059 = vmul.f32 %v1027, %v877
      %v1060 = vmul.f32 %v1028, %v877
      %v1061 = vmul.f32 %v1029, %v877
      %v1062 = vmul.f32 %v1030, %v877
      %v1063 = vmul.f32 %v1031, %v877
      %v1064 = vmul.f32 %v1032, %v877
      %v1065 = vmul.f32 %v1033, %v877
      %v1066 = vmul.f32 %v1034, %v877
      %v1067 = vmul.f32 %v1035, %v877
      %v1068 = vmul.f32 %v1036, %v877
      %v1069 = vmul.f32 %v1037, %v877
      %v1070 = vmul.f32 %v1038, %v1038
      %v1071 = vmul.f32 %v1039, %v1039
      %v1072 = vmul.f32 %v1040, %v1040
      %v1073 = vmul.f32 %v1041, %v1041
      %v1074 = vmul.f32 %v1042, %v1042
      %v1075 = vmul.f32 %v1043, %v1043
      %v1076 = vmul.f32 %v1044, %v1044
      %v1077 = vmul.f32 %v1045, %v1045
      %v1078 = vmul.f32 %v1046, %v1046
      %v1079 = vmul.f32 %v1047, %v1047
      %v1080 = vmul.f32 %v1048, %v1048
      %v1081 = vmul.f32 %v1049, %v1049
      %v1082 = vmul.f32 %v1050, %v1050
      %v1083 = vmul.f32 %v1051, %v1051
      %v1084 = vmul.f32 %v1052, %v1052
      %v1085 = vmul.f32 %v1053, %v1053
      %v1086 = vmul.f32 %v1054, %v1054
      %v1087 = vmul.f32 %v1055, %v1055
      %v1088 = vmul.f32 %v1056, %v1056
      %v1089 = vmul.f32 %v1057, %v1057
      %v1090 = vmul.f32 %v1058, %v1058
      %v1091 = vmul.f32 %v1059, %v1059
      %v1092 = vmul.f32 %v1060, %v1060
      %v1093 = vmul.f32 %v1061, %v1061
      %v1094 = vmul.f32 %v1062, %v1062
      %v1095 = vmul.f32 %v1063, %v1063
      %v1096 = vmul.f32 %v1064, %v1064
      %v1097 = vmul.f32 %v1065, %v1065
      %v1098 = vmul.f32 %v1066, %v1066
      %v1099 = vmul.f32 %v1067, %v1067
      %v1100 = vmul.f32 %v1068, %v1068
      %v1101 = vmul.f32 %v1069, %v1069
      %1102 = vadd.xlane.f32.xlu0 %v1070
      %v1103 = vpop.xlane.xlu0 %1102
      %1104 = vadd.xlane.f32.xlu0 %v1071
      %v1105 = vpop.xlane.xlu0 %1104
      %1106 = vadd.xlane.f32.xlu0 %v1072
      %v1107 = vpop.xlane.xlu0 %1106
      %1108 = vadd.xlane.f32.xlu0 %v1073
      %v1109 = vpop.xlane.xlu0 %1108
      %1110 = vadd.xlane.f32.xlu0 %v1074
      %v1111 = vpop.xlane.xlu0 %1110
      %1112 = vadd.xlane.f32.xlu0 %v1075
      %v1113 = vpop.xlane.xlu0 %1112
      %1114 = vadd.xlane.f32.xlu0 %v1076
      %v1115 = vpop.xlane.xlu0 %1114
      %1116 = vadd.xlane.f32.xlu0 %v1077
      %v1117 = vpop.xlane.xlu0 %1116
      %1118 = vadd.xlane.f32.xlu0 %v1078
      %v1119 = vpop.xlane.xlu0 %1118
      %1120 = vadd.xlane.f32.xlu0 %v1079
      %v1121 = vpop.xlane.xlu0 %1120
      %1122 = vadd.xlane.f32.xlu0 %v1080
      %v1123 = vpop.xlane.xlu0 %1122
      %1124 = vadd.xlane.f32.xlu0 %v1081
      %v1125 = vpop.xlane.xlu0 %1124
      %1126 = vadd.xlane.f32.xlu0 %v1082
      %v1127 = vpop.xlane.xlu0 %1126
      %1128 = vadd.xlane.f32.xlu0 %v1083
      %v1129 = vpop.xlane.xlu0 %1128
      %1130 = vadd.xlane.f32.xlu0 %v1084
      %v1131 = vpop.xlane.xlu0 %1130
      %1132 = vadd.xlane.f32.xlu0 %v1085
      %v1133 = vpop.xlane.xlu0 %1132
      %1134 = vadd.xlane.f32.xlu0 %v1086
      %v1135 = vpop.xlane.xlu0 %1134
      %1136 = vadd.xlane.f32.xlu0 %v1087
      %v1137 = vpop.xlane.xlu0 %1136
      %1138 = vadd.xlane.f32.xlu0 %v1088
      %v1139 = vpop.xlane.xlu0 %1138
      %1140 = vadd.xlane.f32.xlu0 %v1089
      %v1141 = vpop.xlane.xlu0 %1140
      %1142 = vadd.xlane.f32.xlu0 %v1090
      %v1143 = vpop.xlane.xlu0 %1142
      %1144 = vadd.xlane.f32.xlu0 %v1091
      %v1145 = vpop.xlane.xlu0 %1144
      %1146 = vadd.xlane.f32.xlu0 %v1092
      %v1147 = vpop.xlane.xlu0 %1146
      %1148 = vadd.xlane.f32.xlu0 %v1093
      %v1149 = vpop.xlane.xlu0 %1148
      %1150 = vadd.xlane.f32.xlu0 %v1094
      %v1151 = vpop.xlane.xlu0 %1150
      %1152 = vadd.xlane.f32.xlu0 %v1095
      %v1153 = vpop.xlane.xlu0 %1152
      %1154 = vadd.xlane.f32.xlu0 %v1096
      %v1155 = vpop.xlane.xlu0 %1154
      %1156 = vadd.xlane.f32.xlu0 %v1097
      %v1157 = vpop.xlane.xlu0 %1156
      %1158 = vadd.xlane.f32.xlu0 %v1098
      %v1159 = vpop.xlane.xlu0 %1158
      %1160 = vadd.xlane.f32.xlu0 %v1099
      %v1161 = vpop.xlane.xlu0 %1160
      %1162 = vadd.xlane.f32.xlu0 %v1100
      %v1163 = vpop.xlane.xlu0 %1162
      %1164 = vadd.xlane.f32.xlu0 %v1101
      %v1165 = vpop.xlane.xlu0 %1164
      %v1166 = vmul.f32 %v1103, 0.03125
      %v1167 = vmul.f32 %v1105, 0.03125
      %v1168 = vmul.f32 %v1107, 0.03125
      %v1169 = vmul.f32 %v1109, 0.03125
      %v1170 = vmul.f32 %v1111, 0.03125
      %v1171 = vmul.f32 %v1113, 0.03125
      %v1172 = vmul.f32 %v1115, 0.03125
      %v1173 = vmul.f32 %v1117, 0.03125
      %v1174 = vmul.f32 %v1119, 0.03125
      %v1175 = vmul.f32 %v1121, 0.03125
      %v1176 = vmul.f32 %v1123, 0.03125
      %v1177 = vmul.f32 %v1125, 0.03125
      %v1178 = vmul.f32 %v1127, 0.03125
      %v1179 = vmul.f32 %v1129, 0.03125
      %v1180 = vmul.f32 %v1131, 0.03125
      %v1181 = vmul.f32 %v1133, 0.03125
      %v1182 = vmul.f32 %v1135, 0.03125
      %v1183 = vmul.f32 %v1137, 0.03125
      %v1184 = vmul.f32 %v1139, 0.03125
      %v1185 = vmul.f32 %v1141, 0.03125
      %v1186 = vmul.f32 %v1143, 0.03125
      %v1187 = vmul.f32 %v1145, 0.03125
      %v1188 = vmul.f32 %v1147, 0.03125
      %v1189 = vmul.f32 %v1149, 0.03125
      %v1190 = vmul.f32 %v1151, 0.03125
      %v1191 = vmul.f32 %v1153, 0.03125
      %v1192 = vmul.f32 %v1155, 0.03125
      %v1193 = vmul.f32 %v1157, 0.03125
      %v1194 = vmul.f32 %v1159, 0.03125
      %v1195 = vmul.f32 %v1161, 0.03125
      %v1196 = vmul.f32 %v1163, 0.03125
      %v1197 = vmul.f32 %v1165, 0.03125
      %v1198 = vadd.f32 %v1166, 1e-06
      %v1199 = vadd.f32 %v1167, 1e-06
      %v1200 = vadd.f32 %v1168, 1e-06
      %v1201 = vadd.f32 %v1169, 1e-06
      %v1202 = vadd.f32 %v1170, 1e-06
      %v1203 = vadd.f32 %v1171, 1e-06
      %v1204 = vadd.f32 %v1172, 1e-06
      %v1205 = vadd.f32 %v1173, 1e-06
      %v1206 = vadd.f32 %v1174, 1e-06
      %v1207 = vadd.f32 %v1175, 1e-06
      %v1208 = vadd.f32 %v1176, 1e-06
      %v1209 = vadd.f32 %v1177, 1e-06
      %v1210 = vadd.f32 %v1178, 1e-06
      %v1211 = vadd.f32 %v1179, 1e-06
      %v1212 = vadd.f32 %v1180, 1e-06
      %v1213 = vadd.f32 %v1181, 1e-06
      %v1214 = vadd.f32 %v1182, 1e-06
      %v1215 = vadd.f32 %v1183, 1e-06
      %v1216 = vadd.f32 %v1184, 1e-06
      %v1217 = vadd.f32 %v1185, 1e-06
      %v1218 = vadd.f32 %v1186, 1e-06
      %v1219 = vadd.f32 %v1187, 1e-06
      %v1220 = vadd.f32 %v1188, 1e-06
      %v1221 = vadd.f32 %v1189, 1e-06
      %v1222 = vadd.f32 %v1190, 1e-06
      %v1223 = vadd.f32 %v1191, 1e-06
      %v1224 = vadd.f32 %v1192, 1e-06
      %v1225 = vadd.f32 %v1193, 1e-06
      %v1226 = vadd.f32 %v1194, 1e-06
      %v1227 = vadd.f32 %v1195, 1e-06
      %v1228 = vadd.f32 %v1196, 1e-06
      %v1229 = vadd.f32 %v1197, 1e-06
      %v1230 = vrsqrt.pop %v1198
      %v1231 = vrsqrt.pop %v1199
      %v1232 = vrsqrt.pop %v1200
      %v1233 = vrsqrt.pop %v1201
      %v1234 = vrsqrt.pop %v1202
      %v1235 = vrsqrt.pop %v1203
      %v1236 = vrsqrt.pop %v1204
      %v1237 = vrsqrt.pop %v1205
      %v1238 = vrsqrt.pop %v1206
      %v1239 = vrsqrt.pop %v1207
      %v1240 = vrsqrt.pop %v1208
      %v1241 = vrsqrt.pop %v1209
      %v1242 = vrsqrt.pop %v1210
      %v1243 = vrsqrt.pop %v1211
      %v1244 = vrsqrt.pop %v1212
      %v1245 = vrsqrt.pop %v1213
      %v1246 = vrsqrt.pop %v1214
      %v1247 = vrsqrt.pop %v1215
      %v1248 = vrsqrt.pop %v1216
      %v1249 = vrsqrt.pop %v1217
      %v1250 = vrsqrt.pop %v1218
      %v1251 = vrsqrt.pop %v1219
      %v1252 = vrsqrt.pop %v1220
      %v1253 = vrsqrt.pop %v1221
      %v1254 = vrsqrt.pop %v1222
      %v1255 = vrsqrt.pop %v1223
      %v1256 = vrsqrt.pop %v1224
      %v1257 = vrsqrt.pop %v1225
      %v1258 = vrsqrt.pop %v1226
      %v1259 = vrsqrt.pop %v1227
      %v1260 = vrsqrt.pop %v1228
      %v1261 = vrsqrt.pop %v1229
      %v1262 = vmul.f32 %v1038, %v1230
      %v1263 = vmul.f32 %v1039, %v1231
      %v1264 = vmul.f32 %v1040, %v1232
      %v1265 = vmul.f32 %v1041, %v1233
      %v1266 = vmul.f32 %v1042, %v1234
      %v1267 = vmul.f32 %v1043, %v1235
      %v1268 = vmul.f32 %v1044, %v1236
      %v1269 = vmul.f32 %v1045, %v1237
      %v1270 = vmul.f32 %v1046, %v1238
      %v1271 = vmul.f32 %v1047, %v1239
      %v1272 = vmul.f32 %v1048, %v1240
      %v1273 = vmul.f32 %v1049, %v1241
      %v1274 = vmul.f32 %v1050, %v1242
      %v1275 = vmul.f32 %v1051, %v1243
      %v1276 = vmul.f32 %v1052, %v1244
      %v1277 = vmul.f32 %v1053, %v1245
      %v1278 = vmul.f32 %v1054, %v1246
      %v1279 = vmul.f32 %v1055, %v1247
      %v1280 = vmul.f32 %v1056, %v1248
      %v1281 = vmul.f32 %v1057, %v1249
      %v1282 = vmul.f32 %v1058, %v1250
      %v1283 = vmul.f32 %v1059, %v1251
      %v1284 = vmul.f32 %v1060, %v1252
      %v1285 = vmul.f32 %v1061, %v1253
      %v1286 = vmul.f32 %v1062, %v1254
      %v1287 = vmul.f32 %v1063, %v1255
      %v1288 = vmul.f32 %v1064, %v1256
      %v1289 = vmul.f32 %v1065, %v1257
      %v1290 = vmul.f32 %v1066, %v1258
      %v1291 = vmul.f32 %v1067, %v1259
      %v1292 = vmul.f32 %v1068, %v1260
      %v1293 = vmul.f32 %v1069, %v1261
      %v1294 = vld [vmem:[#allocation12] sm:$0x1]
      %v1296 = vlaneseq
      %v1297 = vshrl.u32 %v1296, 7
      %v1298 = vsub.s32 0, %v1297
      %v1299 = vrot.slane %v1294, %v1298
      %v1301 = vmul.f32 %v1262, %v1299
      %v1302 = vmul.f32 %v1263, %v1299
      %v1303 = vmul.f32 %v1264, %v1299
      %v1304 = vmul.f32 %v1265, %v1299
      %v1305 = vmul.f32 %v1266, %v1299
      %v1306 = vmul.f32 %v1267, %v1299
      %v1307 = vmul.f32 %v1268, %v1299
      %v1308 = vmul.f32 %v1269, %v1299
      %v1309 = vmul.f32 %v1270, %v1299
      %v1310 = vmul.f32 %v1271, %v1299
      %v1311 = vmul.f32 %v1272, %v1299
      %v1312 = vmul.f32 %v1273, %v1299
      %v1313 = vmul.f32 %v1274, %v1299
      %v1314 = vmul.f32 %v1275, %v1299
      %v1315 = vmul.f32 %v1276, %v1299
      %v1316 = vmul.f32 %v1277, %v1299
      %v1317 = vmul.f32 %v1278, %v1299
      %v1318 = vmul.f32 %v1279, %v1299
      %v1319 = vmul.f32 %v1280, %v1299
      %v1320 = vmul.f32 %v1281, %v1299
      %v1321 = vmul.f32 %v1282, %v1299
      %v1322 = vmul.f32 %v1283, %v1299
      %v1323 = vmul.f32 %v1284, %v1299
      %v1324 = vmul.f32 %v1285, %v1299
      %v1325 = vmul.f32 %v1286, %v1299
      %v1326 = vmul.f32 %v1287, %v1299
      %v1327 = vmul.f32 %v1288, %v1299
      %v1328 = vmul.f32 %v1289, %v1299
      %v1329 = vmul.f32 %v1290, %v1299
      %v1330 = vmul.f32 %v1291, %v1299
      %v1331 = vmul.f32 %v1292, %v1299
      %v1332 = vmul.f32 %v1293, %v1299
      %v1333 = vld [vmem:[#allocation14] sm:$0x1]
      %v1335 = vlaneseq
      %v1336 = vshrl.u32 %v1335, 7
      %v1337 = vsub.s32 0, %v1336
      %v1338 = vrot.slane %v1333, %v1337
      %v1340 = vadd.f32 %v1301, %v1338
      %v1341 = vadd.f32 %v1302, %v1338
      %v1342 = vadd.f32 %v1303, %v1338
      %v1343 = vadd.f32 %v1304, %v1338
      %v1344 = vadd.f32 %v1305, %v1338
      %v1345 = vadd.f32 %v1306, %v1338
      %v1346 = vadd.f32 %v1307, %v1338
      %v1347 = vadd.f32 %v1308, %v1338
      %v1348 = vadd.f32 %v1309, %v1338
      %v1349 = vadd.f32 %v1310, %v1338
      %v1350 = vadd.f32 %v1311, %v1338
      %v1351 = vadd.f32 %v1312, %v1338
      %v1352 = vadd.f32 %v1313, %v1338
      %v1353 = vadd.f32 %v1314, %v1338
      %v1354 = vadd.f32 %v1315, %v1338
      %v1355 = vadd.f32 %v1316, %v1338
      %v1356 = vadd.f32 %v1317, %v1338
      %v1357 = vadd.f32 %v1318, %v1338
      %v1358 = vadd.f32 %v1319, %v1338
      %v1359 = vadd.f32 %v1320, %v1338
      %v1360 = vadd.f32 %v1321, %v1338
      %v1361 = vadd.f32 %v1322, %v1338
      %v1362 = vadd.f32 %v1323, %v1338
      %v1363 = vadd.f32 %v1324, %v1338
      %v1364 = vadd.f32 %v1325, %v1338
      %v1365 = vadd.f32 %v1326, %v1338
      %v1366 = vadd.f32 %v1327, %v1338
      %v1367 = vadd.f32 %v1328, %v1338
      %v1368 = vadd.f32 %v1329, %v1338
      %v1369 = vadd.f32 %v1330, %v1338
      %v1370 = vadd.f32 %v1331, %v1338
      %v1371 = vadd.f32 %v1332, %v1338
      %1372 = vst [vmem:[#allocation15] sm:$0xff] %v1340
      %1373 = vst [vmem:[#allocation15 + $0x8] sm:$0xff] %v1341
      %1374 = vst [vmem:[#allocation15 + $0x10] sm:$0xff] %v1342
      %1375 = vst [vmem:[#allocation15 + $0x18] sm:$0xff] %v1343
      %1376 = vst [vmem:[#allocation15 + $0x20] sm:$0xff] %v1344
      %1377 = vst [vmem:[#allocation15 + $0x28] sm:$0xff] %v1345
      %1378 = vst [vmem:[#allocation15 + $0x30] sm:$0xff] %v1346
      %1379 = vst [vmem:[#allocation15 + $0x38] sm:$0xff] %v1347
      %1380 = vst [vmem:[#allocation15 + $0x40] sm:$0xff] %v1348
      %1381 = vst [vmem:[#allocation15 + $0x48] sm:$0xff] %v1349
      %1382 = vst [vmem:[#allocation15 + $0x50] sm:$0xff] %v1350
      %1383 = vst [vmem:[#allocation15 + $0x58] sm:$0xff] %v1351
      %1384 = vst [vmem:[#allocation15 + $0x60] sm:$0xff] %v1352
      %1385 = vst [vmem:[#allocation15 + $0x68] sm:$0xff] %v1353
      %1386 = vst [vmem:[#allocation15 + $0x70] sm:$0xff] %v1354
      %1387 = vst [vmem:[#allocation15 + $0x78] sm:$0xff] %v1355
      %1388 = vst [vmem:[#allocation15 + $0x80] sm:$0xff] %v1356
      %1389 = vst [vmem:[#allocation15 + $0x88] sm:$0xff] %v1357
      %1390 = vst [vmem:[#allocation15 + $0x90] sm:$0xff] %v1358
      %1391 = vst [vmem:[#allocation15 + $0x98] sm:$0xff] %v1359
      %1392 = vst [vmem:[#allocation15 + $0xa0] sm:$0xff] %v1360
      %1393 = vst [vmem:[#allocation15 + $0xa8] sm:$0xff] %v1361
      %1394 = vst [vmem:[#allocation15 + $0xb0] sm:$0xff] %v1362
      %1395 = vst [vmem:[#allocation15 + $0xb8] sm:$0xff] %v1363
      %1396 = vst [vmem:[#allocation15 + $0xc0] sm:$0xff] %v1364
      %1397 = vst [vmem:[#allocation15 + $0xc8] sm:$0xff] %v1365
      %1398 = vst [vmem:[#allocation15 + $0xd0] sm:$0xff] %v1366
      %1399 = vst [vmem:[#allocation15 + $0xd8] sm:$0xff] %v1367
      %1400 = vst [vmem:[#allocation15 + $0xe0] sm:$0xff] %v1368
      %1401 = vst [vmem:[#allocation15 + $0xe8] sm:$0xff] %v1369
      %1402 = vst [vmem:[#allocation15 + $0xf0] sm:$0xff] %v1370
      %1403 = vst [vmem:[#allocation15 + $0xf8] sm:$0xff] %v1371
    $region65: #{tpu_custom_call.1} parent=1 // pred_fallthru
      _
    // Predicated region
    $region66: #{tpu_custom_call.1} parent=1 // pred_check
      _
    $region67: #{tpu_custom_call.1} parent=1 // pred_check_branch
      %1405 = sbr.rel (0) target = $region69
    $region68: #{tpu_custom_call.1} parent=1 // pred_region
      %s1407 = ssub.s32 4096, 4096
      %1408 = vsyncadd [#allocation5], %s1407
      %s1409 = sshll.u32 [#allocation15], 4
      %s1410 = int_to_ptr.vmem [resolvable:$true] %s1409
      %1415 = dma.vmem_to_hbm [thread:$0]  %s1410, 4096, %s7, [#allocation5], 128, 128, 8
    $region69: #{tpu_custom_call.1} parent=1 // pred_fallthru
      _
    // Predicated region
    $region70: #{tpu_custom_call.1} parent=1 // pred_check
      _
    $region71: #{tpu_custom_call.1} parent=1 // pred_check_branch
      %1417 = sbr.rel (0) target = $region73
    $region72: #{tpu_custom_call.1} parent=1 // pred_region
      %1418 = dma.done [#allocation5], 4096
    $region73: #{tpu_custom_call.1} parent=1 // pred_fallthru
      _
    %1419 = vsyncpa [#allocation4], 1
    %1420 = vsyncpa [#allocation7], 1
    %1421 = vsyncpa [#allocation10], 1
    %1422 = vsyncpa [#allocation13], 1
    %1423 = vsyncpa [#allocation5], 1

</llo_original>
